<compile_context>
chip_gen: v7x
topology: tpu7x:2x2x1
jax: 0.10.0
libtpu: 0.0.40
codegen_flags: <defaults>
</compile_context>

<pallas_src>
import jax
import jax.numpy as jnp
from jax import lax
from jax.experimental import pallas as pl
from jax.experimental.pallas import tpu as pltpu

# ----------------------------- small shapes ---------------------------------
B = 2              # batch
C_IN = 3           # RGB input channels (as in DB_CNN)
H = W = 16         # input spatial size
C_SYNTH = 8        # stand-in for the 128-channel S_CNN feature map
C_AUTH = 16        # stand-in for the 512-channel VGG16-bn feature map
C_TOT = C_SYNTH + C_AUTH                # 24
STRIDE = 2
OH = OW = H // STRIDE                   # 8
S_SP = OH * OW                          # 64 spatial positions
N_SYNTH = C_SYNTH * S_SP                # 512   (128*28*28 in the original)
N_AUTH = C_AUTH * S_SP                  # 1024  (512*28*28 in the original)
D_CBP = C_SYNTH * C_AUTH                # 128   (128*512  in the original)
K_RAW = C_IN * 9                        # 27
K_PAD = 32                              # conv contraction dim padded 27 -> 32
DROPOUT_P = 0.2
DROP_THRESH = int(round(DROPOUT_P * (1 << 23)))   # integer dropout threshold
BN_EPS = 1e-5
L2_EPS = 1e-12

VMEM = pltpu.MemorySpace.VMEM


# ------------------------------ Pallas kernels -------------------------------
def _conv_mm_relu_kernel(p_ref, w_ref, b_ref, o_ref):
    """Fused two-branch im2col conv: out = relu(patches @ W_comb + b_comb).

    p_ref: [B*OH*OW, K_PAD]   rows in (b, oh, ow) order (cols 27.. are zero pad)
    w_ref: [K_PAD, C_TOT]     columns = [synth channels | auth channels]
    b_ref: [1, C_TOT]
    o_ref: [B*OH*OW, C_TOT]
    """
    acc = jnp.dot(p_ref[...], w_ref[...], preferred_element_type=jnp.float32)
    o_ref[...] = jnp.maximum(acc + b_ref[...], 0.0)


def _cbp_head_kernel(f_ref, s_ref, cs_ref, ics_ref, g_ref, be_ref,
                     fw_ref, fb_ref, rnd_ref, o_ref):
    """Fused CBP head: merged count sketch + DFT circular conv + L2 norm +
    BatchNorm1d + dropout + fc.

    f_ref:   [B, S_SP*C_TOT] f32   flattened conv features, (s, c) order
    s_ref:   [S_SP*C_TOT, 2*D] bf16  merged count-sketch matrix -> [sx | sy]
    cs_ref:  [D, 2*D] f32   forward real-DFT:  [cos | sin]
    ics_ref: [2*D, D] f32   inverse real-DFT:  [cos ; sin] / D
    g_ref / be_ref: [1, D]  BatchNorm1d affine
    fw_ref:  [1, D]  fc weight row, pre-scaled by 1/(1-p)
    fb_ref:  [1, 1]  fc bias
    rnd_ref: [B, D] int32 uniform in [0, 2^23)   (dropout randomness)
    o_ref:   [B, 1]
    """
    # --- merged count sketch (one MXU dot, bf16 operands, f32 accumulate) ---
    sk = jnp.dot(f_ref[...].astype(jnp.bfloat16), s_ref[...],
                 preferred_element_type=jnp.float32)             # [B, 2D]
    sx = sk[:, :D_CBP]                                           # [B, D]
    sy = sk[:, D_CBP:]                                           # [B, D]

    # --- circular convolution bi = ifft(fft(sx) * fft(sy)).real -------------
    # Computed with explicit real-DFT matmuls on the MXU (no rolls, no unroll):
    #   F_r = x @ Cos,  F_s = x @ Sin  (=> F_i = -F_s)
    #   Pr  = Fxr*Fyr - Fxs*Fys,  Ps = Fxr*Fys + Fxs*Fyr  (= -Im(Fx*Fy))
    #   bi  = (Pr @ Cos + Ps @ Sin) / D
    fx = jnp.dot(sx, cs_ref[...], preferred_element_type=jnp.float32)  # [B, 2D]
    fy = jnp.dot(sy, cs_ref[...], preferred_element_type=jnp.float32)  # [B, 2D]
    fxr, fxs = fx[:, :D_CBP], fx[:, D_CBP:]
    fyr, fys = fy[:, :D_CBP], fy[:, D_CBP:]
    pr = fxr * fyr - fxs * fys
    ps = fxr * fys + fxs * fyr
    bi = jnp.dot(jnp.concatenate([pr, ps], axis=1), ics_ref[...],
                 preferred_element_type=jnp.float32)             # [B, D]

    # --- F.normalize: x / max(||x||_2, 1e-12), via rsqrt on the EUP ---------
    ss = jnp.sum(bi * bi, axis=1, keepdims=True)
    xn = bi * lax.rsqrt(jnp.maximum(ss, L2_EPS * L2_EPS))

    # --- BatchNorm1d(D), training mode: biased batch stats, eps=1e-5 --------
    mu = jnp.mean(xn, axis=0, keepdims=True)
    var = jnp.mean((xn - mu) ** 2, axis=0, keepdims=True)
    y = (xn - mu) * lax.rsqrt(var + BN_EPS) * g_ref[...] + be_ref[...]

    # --- Dropout(p=0.2) (1/(1-p) scale folded into fw_ref) + fc --------------
    y = jnp.where(rnd_ref[...] >= DROP_THRESH, y, 0.0)
    # Linear(D, 1) as VPU multiply + lane reduction (avoids an N=1 MXU dot).
    o_ref[...] = jnp.sum(y * fw_ref[...], axis=1, keepdims=True) + fb_ref[...]


# ------------------------------ JAX wrappers ---------------------------------
def _im2col(x, stride=STRIDE, pad=1):
    """x: [B, C, H, W] -> patches [B*OH*OW, K_PAD]; rows (b, oh, ow), cols (c, kh, kw)."""
    Bb, C, Hh, Ww = x.shape
    xp = jnp.pad(x, ((0, 0), (0, 0), (pad, pad), (pad, pad)))
    oh = (Hh + 2 * pad - 3) // stride + 1
    ow = (Ww + 2 * pad - 3) // stride + 1
    cols = []
    for ki in range(3):
        for kj in range(3):
            cols.append(xp[:, :, ki:ki + stride * oh:stride,
                           kj:kj + stride * ow:stride])
    patches = (jnp.stack(cols, axis=2)          # [B, C, 9, OH, OW]
               .transpose(0, 3, 4, 1, 2)        # [B, OH, OW, C, 9]
               .reshape(Bb * oh * ow, C * 9))
    # pad contraction dim 27 -> 32 (matching zero rows appended to w_conv)
    return jnp.pad(patches, ((0, 0), (0, K_PAD - K_RAW)))


def db_cnn_forward(params, x, drop_rnd):
    # ONE shared im2col pass feeding the single fused two-branch conv kernel.
    patches = _im2col(x)                                      # [B*S, 32]
    feats = pl.pallas_call(
        _conv_mm_relu_kernel,
        out_shape=jax.ShapeDtypeStruct((B * S_SP, C_TOT), jnp.float32),
        in_specs=[pl.BlockSpec(memory_space=VMEM)] * 3,
        out_specs=pl.BlockSpec(memory_space=VMEM),
    )(patches, params["w_conv"], params["b_conv"])            # [B*S, 24]

    # Contiguous reshape only (no transpose, no per-branch slicing): S_comb's
    # rows were permuted once at init to this (spatial, channel) order, so the
    # merged sketch below equals the reference NCHW-flatten formulation.
    feats_flat = feats.reshape(B, S_SP * C_TOT)               # [B, 1536]

    # Fully fused head: merged sketch + DFT circular conv + normalize + BN +
    # dropout + fc, in a single pallas_call (~1.2 MB of VMEM-resident operands).
    return pl.pallas_call(
        _cbp_head_kernel,
        out_shape=jax.ShapeDtypeStruct((B, 1), jnp.float32),
        in_specs=[pl.BlockSpec(memory_space=VMEM)] * 9,
        out_specs=pl.BlockSpec(memory_space=VMEM),
    )(feats_flat, params["s_comb"], params["dft_fwd"], params["dft_inv"],
      params["gamma"], params["beta"], params["fc_w_drop"], params["fc_b"],
      drop_rnd)


# ----------------------------- parameter setup -------------------------------
def init_params(key):
    ks = jax.random.split(key, 7)
    p = {}

    # extractor stand-ins (concatenated once into a single matmul operand)
    w_synth = jax.random.normal(ks[0], (C_SYNTH, C_IN, 3, 3), jnp.float32) * 0.1
    w_auth = jax.random.normal(ks[1], (C_AUTH, C_IN, 3, 3), jnp.float32) * 0.1
    w = jnp.concatenate([w_synth.reshape(C_SYNTH, K_RAW),
                         w_auth.reshape(C_AUTH, K_RAW)], axis=0).T   # [27, 24]
    p["w_conv"] = jnp.pad(w, ((0, K_PAD - K_RAW), (0, 0)))           # [32, 24]
    p["b_conv"] = jnp.zeros((1, C_TOT), jnp.float32)

    # CompactBilinearPooling count-sketch tables (hash h, sign s), indexed by
    # the reference NCHW flatten order (c*S_SP + s).
    h1 = jax.random.randint(ks[2], (N_SYNTH,), 0, D_CBP)
    s1 = jnp.where(jax.random.bernoulli(ks[3], 0.5, (N_SYNTH,)), 1.0, -1.0)
    h2 = jax.random.randint(ks[4], (N_AUTH,), 0, D_CBP)
    s2 = jnp.where(jax.random.bernoulli(ks[5], 0.5, (N_AUTH,)), 1.0, -1.0)
    S1 = jax.nn.one_hot(h1, D_CBP, dtype=jnp.float32) * s1[:, None]  # [N_SYNTH, D]
    S2 = jax.nn.one_hot(h2, D_CBP, dtype=jnp.float32) * s2[:, None]  # [N_AUTH, D]

    # One-time row permutation NCHW (c*S+s) -> kernel order (s*C_TOT + c), and
    # merge both sketches into one [S_SP*C_TOT, 2D] operand -> ONE MXU dot
    # produces [sx | sy].  Values are exactly 0/+-1, so bf16 storage is exact.
    S1_sc = S1.reshape(C_SYNTH, S_SP, D_CBP).transpose(1, 0, 2)      # [S, Cs, D]
    S2_sc = S2.reshape(C_AUTH, S_SP, D_CBP).transpose(1, 0, 2)       # [S, Ca, D]
    top = jnp.concatenate([S1_sc, jnp.zeros((S_SP, C_SYNTH, D_CBP))], axis=2)
    bot = jnp.concatenate([jnp.zeros((S_SP, C_AUTH, D_CBP)), S2_sc], axis=2)
    p["s_comb"] = (jnp.concatenate([top, bot], axis=1)               # [S, C_TOT, 2D]
                   .reshape(S_SP * C_TOT, 2 * D_CBP)
                   .astype(jnp.bfloat16))

    # Real-DFT matrices for the circular convolution (angles from exact
    # integer j*m mod D, so the f32 trig entries are ~1e-7 accurate).
    idx = (jnp.arange(D_CBP)[:, None] * jnp.arange(D_CBP)[None, :]) % D_CBP
    ang = (2.0 * jnp.pi / D_CBP) * idx.astype(jnp.float32)
    cosm, sinm = jnp.cos(ang), jnp.sin(ang)
    p["dft_fwd"] = jnp.concatenate([cosm, sinm], axis=1)             # [D, 2D]
    p["dft_inv"] = jnp.concatenate([cosm, sinm], axis=0) / D_CBP     # [2D, D]

    # BatchNorm1d affine params (torch defaults)
    p["gamma"] = jnp.ones((1, D_CBP), jnp.float32)
    p["beta"] = jnp.zeros((1, D_CBP), jnp.float32)

    # fc: kaiming_normal_ (fan_in), zero bias; dropout 1/(1-p) folded in.
    fc_w = (jax.random.normal(ks[6], (1, D_CBP), jnp.float32)
            * jnp.sqrt(2.0 / D_CBP))
    p["fc_w_drop"] = fc_w / (1.0 - DROPOUT_P)
    p["fc_b"] = jnp.zeros((1, 1), jnp.float32)
    return p


# ---------------------------------- main --------------------------------------
if __name__ == "__main__":
    key = jax.random.PRNGKey(0)
    pkey, xkey, dkey = jax.random.split(key, 3)
    params = init_params(pkey)
    x = jax.random.normal(xkey, (B, C_IN, H, W), jnp.float32)
    # dropout randomness: uniform int32 in [0, 2^23), generated host-side.
    drop_rnd = jax.random.randint(dkey, (B, D_CBP), 0, 1 << 23, dtype=jnp.int32)

    fwd = jax.jit(db_cnn_forward)
    out = fwd(params, x, drop_rnd)
    jax.block_until_ready(out)
    assert out.shape == (B, 1) and out.dtype == jnp.float32
    print("KERNEL_OK")
</pallas_src>

<mosaic_0001>
module attributes {stable_mosaic.version = 11 : i64} {
  func.func @_conv_mm_relu_kernel(%arg0: memref<128x32xf32, #tpu.memory_space<vmem>>, %arg1: memref<32x24xf32, #tpu.memory_space<vmem>>, %arg2: memref<1x24xf32, #tpu.memory_space<vmem>>, %arg3: memref<128x24xf32, #tpu.memory_space<vmem>>) attributes {dimension_semantics = [], scalar_prefetch = 0 : i64, scratch_operands = 0 : i64, tpu.core_type = #tpu.core_type<tc>} {
    %c0 = arith.constant 0 : index
    %c0_0 = arith.constant 0 : index
    %0 = vector.load %arg0[%c0, %c0_0] : memref<128x32xf32, #tpu.memory_space<vmem>>, vector<128x32xf32>
    %c0_1 = arith.constant 0 : index
    %c0_2 = arith.constant 0 : index
    %1 = vector.load %arg1[%c0_1, %c0_2] : memref<32x24xf32, #tpu.memory_space<vmem>>, vector<32x24xf32>
    %cst = arith.constant dense<0.000000e+00> : vector<128x24xf32>
    %2 = tpu.matmul %0, %1, %cst {dimension_numbers = #tpu.dot_dimension_numbers<[1], [0], [0], [1], [0, 0, 1, 1], [], []>} : vector<128x32xf32>, vector<32x24xf32>, vector<128x24xf32> -> vector<128x24xf32>
    %c0_3 = arith.constant 0 : index
    %c0_4 = arith.constant 0 : index
    %3 = vector.load %arg2[%c0_3, %c0_4] : memref<1x24xf32, #tpu.memory_space<vmem>>, vector<1x24xf32>
    %4 = vector.broadcast %3 : vector<1x24xf32> to vector<128x24xf32>
    %5 = arith.addf %2, %4 : vector<128x24xf32>
    %cst_5 = arith.constant 0.000000e+00 : f32
    %6 = vector.broadcast %cst_5 : f32 to vector<128x24xf32>
    %7 = arith.maximumf %5, %6 : vector<128x24xf32>
    %c0_6 = arith.constant 0 : index
    %c0_7 = arith.constant 0 : index
    %8 = vector.load %arg3[%c0_6, %c0_7] : memref<128x24xf32, #tpu.memory_space<vmem>>, vector<128x24xf32>
    tpu.vector_store %arg3[%c0_6, %c0_7], %7 {strides = array<i32>} : memref<128x24xf32, #tpu.memory_space<vmem>>, vector<128x24xf32>,
    return
  }
}

module attributes {stable_mosaic.version = 11 : i64} {
  func.func @_cbp_head_kernel(%arg0: memref<2x1536xf32, #tpu.memory_space<vmem>>, %arg1: memref<1536x256xbf16, #tpu.memory_space<vmem>>, %arg2: memref<128x256xf32, #tpu.memory_space<vmem>>, %arg3: memref<256x128xf32, #tpu.memory_space<vmem>>, %arg4: memref<1x128xf32, #tpu.memory_space<vmem>>, %arg5: memref<1x128xf32, #tpu.memory_space<vmem>>, %arg6: memref<1x128xf32, #tpu.memory_space<vmem>>, %arg7: memref<1x1xf32, #tpu.memory_space<vmem>>, %arg8: memref<2x128xi32, #tpu.memory_space<vmem>>, %arg9: memref<2x1xf32, #tpu.memory_space<vmem>>) attributes {dimension_semantics = [], scalar_prefetch = 0 : i64, scratch_operands = 0 : i64, tpu.core_type = #tpu.core_type<tc>} {
    %c0 = arith.constant 0 : index
    %c0_0 = arith.constant 0 : index
    %0 = vector.load %arg0[%c0, %c0_0] : memref<2x1536xf32, #tpu.memory_space<vmem>>, vector<2x1536xf32>
    %1 = arith.truncf %0 : vector<2x1536xf32> to vector<2x1536xbf16>
    %c0_1 = arith.constant 0 : index
    %c0_2 = arith.constant 0 : index
    %2 = vector.load %arg1[%c0_1, %c0_2] : memref<1536x256xbf16, #tpu.memory_space<vmem>>, vector<1536x256xbf16>
    %cst = arith.constant dense<0.000000e+00> : vector<2x256xf32>
    %3 = tpu.matmul %1, %2, %cst {dimension_numbers = #tpu.dot_dimension_numbers<[1], [0], [0], [1], [0, 0, 1, 1], [], []>} : vector<2x1536xbf16>, vector<1536x256xbf16>, vector<2x256xf32> -> vector<2x256xf32>
    %4 = vector.extract_strided_slice %3 {offsets = [0, 0], sizes = [2, 128], strides = [1, 1]} : vector<2x256xf32> to vector<2x128xf32>
    %5 = vector.extract_strided_slice %3 {offsets = [0, 128], sizes = [2, 128], strides = [1, 1]} : vector<2x256xf32> to vector<2x128xf32>
    %c0_3 = arith.constant 0 : index
    %c0_4 = arith.constant 0 : index
    %6 = vector.load %arg2[%c0_3, %c0_4] : memref<128x256xf32, #tpu.memory_space<vmem>>, vector<128x256xf32>
    %cst_5 = arith.constant dense<0.000000e+00> : vector<2x256xf32>
    %7 = tpu.matmul %4, %6, %cst_5 {dimension_numbers = #tpu.dot_dimension_numbers<[1], [0], [0], [1], [0, 0, 1, 1], [], []>} : vector<2x128xf32>, vector<128x256xf32>, vector<2x256xf32> -> vector<2x256xf32>
    %c0_6 = arith.constant 0 : index
    %c0_7 = arith.constant 0 : index
    %8 = vector.load %arg2[%c0_6, %c0_7] : memref<128x256xf32, #tpu.memory_space<vmem>>, vector<128x256xf32>
    %cst_8 = arith.constant dense<0.000000e+00> : vector<2x256xf32>
    %9 = tpu.matmul %5, %8, %cst_8 {dimension_numbers = #tpu.dot_dimension_numbers<[1], [0], [0], [1], [0, 0, 1, 1], [], []>} : vector<2x128xf32>, vector<128x256xf32>, vector<2x256xf32> -> vector<2x256xf32>
    %10 = vector.extract_strided_slice %7 {offsets = [0, 0], sizes = [2, 128], strides = [1, 1]} : vector<2x256xf32> to vector<2x128xf32>
    %11 = vector.extract_strided_slice %7 {offsets = [0, 128], sizes = [2, 128], strides = [1, 1]} : vector<2x256xf32> to vector<2x128xf32>
    %12 = vector.extract_strided_slice %9 {offsets = [0, 0], sizes = [2, 128], strides = [1, 1]} : vector<2x256xf32> to vector<2x128xf32>
    %13 = vector.extract_strided_slice %9 {offsets = [0, 128], sizes = [2, 128], strides = [1, 1]} : vector<2x256xf32> to vector<2x128xf32>
    %14 = arith.mulf %10, %12 : vector<2x128xf32>
    %15 = arith.mulf %11, %13 : vector<2x128xf32>
    %16 = arith.subf %14, %15 : vector<2x128xf32>
    %17 = arith.mulf %10, %13 : vector<2x128xf32>
    %18 = arith.mulf %11, %12 : vector<2x128xf32>
    %19 = arith.addf %17, %18 : vector<2x128xf32>
    %20 = tpu.concatenate %16, %19 in 1 : vector<2x128xf32>, vector<2x128xf32> -> vector<2x256xf32>
    %c0_9 = arith.constant 0 : index
    %c0_10 = arith.constant 0 : index
    %21 = vector.load %arg3[%c0_9, %c0_10] : memref<256x128xf32, #tpu.memory_space<vmem>>, vector<256x128xf32>
    %cst_11 = arith.constant dense<0.000000e+00> : vector<2x128xf32>
    %22 = tpu.matmul %20, %21, %cst_11 {dimension_numbers = #tpu.dot_dimension_numbers<[1], [0], [0], [1], [0, 0, 1, 1], [], []>} : vector<2x256xf32>, vector<256x128xf32>, vector<2x128xf32> -> vector<2x128xf32>
    %23 = arith.mulf %22, %22 : vector<2x128xf32>
    %cst_12 = arith.constant dense<0.000000e+00> : vector<2xf32>
    %24 = vector.multi_reduction <add>, %23, %cst_12 [1] : vector<2x128xf32> to vector<2xf32>
    %25 = vector.shape_cast %24 : vector<2xf32> to vector<2x1xf32>
    %cst_13 = arith.constant 1.000000e-24 : f32
    %26 = vector.broadcast %cst_13 : f32 to vector<2x1xf32>
    %27 = arith.maximumf %25, %26 : vector<2x1xf32>
    %28 = math.rsqrt %27 : vector<2x1xf32>
    %29 = vector.broadcast %28 : vector<2x1xf32> to vector<2x128xf32>
    %30 = arith.mulf %22, %29 : vector<2x128xf32>
    %cst_14 = arith.constant dense<0.000000e+00> : vector<128xf32>
    %31 = vector.multi_reduction <add>, %30, %cst_14 [0] : vector<2x128xf32> to vector<128xf32>
    %32 = vector.shape_cast %31 : vector<128xf32> to vector<1x128xf32>
    %cst_15 = arith.constant 2.000000e+00 : f32
    %33 = vector.broadcast %cst_15 : f32 to vector<1x128xf32>
    %34 = arith.divf %32, %33 : vector<1x128xf32>
    %35 = vector.broadcast %34 : vector<1x128xf32> to vector<2x128xf32>
    %36 = arith.subf %30, %35 : vector<2x128xf32>
    %37 = arith.mulf %36, %36 : vector<2x128xf32>
    %cst_16 = arith.constant dense<0.000000e+00> : vector<128xf32>
    %38 = vector.multi_reduction <add>, %37, %cst_16 [0] : vector<2x128xf32> to vector<128xf32>
    %39 = vector.shape_cast %38 : vector<128xf32> to vector<1x128xf32>
    %cst_17 = arith.constant 2.000000e+00 : f32
    %40 = vector.broadcast %cst_17 : f32 to vector<1x128xf32>
    %41 = arith.divf %39, %40 : vector<1x128xf32>
    %42 = vector.broadcast %34 : vector<1x128xf32> to vector<2x128xf32>
    %43 = arith.subf %30, %42 : vector<2x128xf32>
    %cst_18 = arith.constant 9.99999974E-6 : f32
    %44 = vector.broadcast %cst_18 : f32 to vector<1x128xf32>
    %45 = arith.addf %41, %44 : vector<1x128xf32>
    %46 = math.rsqrt %45 : vector<1x128xf32>
    %47 = vector.broadcast %46 : vector<1x128xf32> to vector<2x128xf32>
    %48 = arith.mulf %43, %47 : vector<2x128xf32>
    %c0_19 = arith.constant 0 : index
    %c0_20 = arith.constant 0 : index
    %49 = vector.load %arg4[%c0_19, %c0_20] : memref<1x128xf32, #tpu.memory_space<vmem>>, vector<1x128xf32>
    %50 = vector.broadcast %49 : vector<1x128xf32> to vector<2x128xf32>
    %51 = arith.mulf %48, %50 : vector<2x128xf32>
    %c0_21 = arith.constant 0 : index
    %c0_22 = arith.constant 0 : index
    %52 = vector.load %arg5[%c0_21, %c0_22] : memref<1x128xf32, #tpu.memory_space<vmem>>, vector<1x128xf32>
    %53 = vector.broadcast %52 : vector<1x128xf32> to vector<2x128xf32>
    %54 = arith.addf %51, %53 : vector<2x128xf32>
    %c0_23 = arith.constant 0 : index
    %c0_24 = arith.constant 0 : index
    %55 = vector.load %arg8[%c0_23, %c0_24] : memref<2x128xi32, #tpu.memory_space<vmem>>, vector<2x128xi32>
    %c1677722_i32 = arith.constant 1677722 : i32
    %56 = vector.broadcast %c1677722_i32 : i32 to vector<2x128xi32>
    %57 = arith.cmpi sge, %55, %56 : vector<2x128xi32>
    %cst_25 = arith.constant 0.000000e+00 : f32
    %58 = vector.broadcast %cst_25 : f32 to vector<2x128xf32>
    %59 = arith.select %57, %54, %58 : vector<2x128xi1>, vector<2x128xf32>
    %c0_26 = arith.constant 0 : index
    %c0_27 = arith.constant 0 : index
    %60 = vector.load %arg6[%c0_26, %c0_27] : memref<1x128xf32, #tpu.memory_space<vmem>>, vector<1x128xf32>
    %61 = vector.broadcast %60 : vector<1x128xf32> to vector<2x128xf32>
    %62 = arith.mulf %59, %61 : vector<2x128xf32>
    %cst_28 = arith.constant dense<0.000000e+00> : vector<2xf32>
    %63 = vector.multi_reduction <add>, %62, %cst_28 [1] : vector<2x128xf32> to vector<2xf32>
    %64 = vector.shape_cast %63 : vector<2xf32> to vector<2x1xf32>
    %c0_29 = arith.constant 0 : index
    %c0_30 = arith.constant 0 : index
    %65 = vector.load %arg7[%c0_29, %c0_30] : memref<1x1xf32, #tpu.memory_space<vmem>>, vector<1x1xf32>
    %66 = vector.broadcast %65 : vector<1x1xf32> to vector<2x1xf32>
    %67 = arith.addf %64, %66 : vector<2x1xf32>
    %c0_31 = arith.constant 0 : index
    %c0_32 = arith.constant 0 : index
    %68 = vector.load %arg9[%c0_31, %c0_32] : memref<2x1xf32, #tpu.memory_space<vmem>>, vector<2x1xf32>
    tpu.vector_store %arg9[%c0_31, %c0_32], %67 {strides = array<i32>} : memref<2x1xf32, #tpu.memory_space<vmem>>, vector<2x1xf32>,
    return
  }
}

</mosaic_0001>

<llo_original>
// kernel: db_cnn_forward.2
$region0: #{db_cnn_forward.2}
  #allocation0 [shape = 'u32[]', space=smem, size = 0x4, offset = 0x4, fixed_abs, tag = 'smem constant byte address 0x4 - core index']
  #allocation1 [shape = 'u32[144,128]{1,0:T(1,128)}', space=vmem, size = 0x12000, scoped, tag = 'internal scratch']
  %s0 = inlined_call_operand.vmem [shape: f32[128,32], index: 0, kind: input, shape index: {}]
  %s1 = inlined_call_operand.vmem [shape: f32[32,24], index: 1, kind: input, shape index: {}]
  %s2 = inlined_call_operand.vmem [shape: f32[1,24], index: 2, kind: input, shape index: {}]
  %s3 = inlined_call_operand.vmem [shape: f32[128,24], index: 3, kind: output, shape index: {}]
  %s4 = sld [smem:[#allocation0]]
  $region22: #{db_cnn_forward.2} parent=0
    _
  %s6 = ssub.s32 1, %s4
  %s7 = scalar_select 0, %s6, %s4
  // Predicated region
  $region2: #{db_cnn_forward.2} parent=0 // pred_check
    _
  $region3: #{db_cnn_forward.2} parent=0 // pred_check_branch
    %9 = sbr.rel (0) target = $region5
  $region4: #{db_cnn_forward.2} parent=0 // pred_region
    _
  $region5: #{db_cnn_forward.2} parent=0 // pred_fallthru
    _
  // Predicated region
  $region6: #{db_cnn_forward.2} parent=0 // pred_check
    _
  $region7: #{db_cnn_forward.2} parent=0 // pred_check_branch
    %11 = sbr.rel (0) target = $region9
  $region8: #{db_cnn_forward.2} parent=0 // pred_region
    _
  $region9: #{db_cnn_forward.2} parent=0 // pred_fallthru
    _
  // Predicated region
  $region10: #{db_cnn_forward.2} parent=0 // pred_check
    _
  $region11: #{db_cnn_forward.2} parent=0 // pred_check_branch
    %13 = sbr.rel (0) target = $region13
  $region12: #{db_cnn_forward.2} parent=0 // pred_region
    _
  $region13: #{db_cnn_forward.2} parent=0 // pred_fallthru
    _
  %v14 = vld [vmem:[%s0] sm:$0xff]
  %v15 = vld [vmem:[%s0 + $0x8] sm:$0xff]
  %v16 = vld [vmem:[%s0 + $0x10] sm:$0xff]
  %v17 = vld [vmem:[%s0 + $0x18] sm:$0xff]
  %v18 = vld [vmem:[%s0 + $0x20] sm:$0xff]
  %v19 = vld [vmem:[%s0 + $0x28] sm:$0xff]
  %v20 = vld [vmem:[%s0 + $0x30] sm:$0xff]
  %v21 = vld [vmem:[%s0 + $0x38] sm:$0xff]
  %v22 = vld [vmem:[%s0 + $0x40] sm:$0xff]
  %v23 = vld [vmem:[%s0 + $0x48] sm:$0xff]
  %v24 = vld [vmem:[%s0 + $0x50] sm:$0xff]
  %v25 = vld [vmem:[%s0 + $0x58] sm:$0xff]
  %v26 = vld [vmem:[%s0 + $0x60] sm:$0xff]
  %v27 = vld [vmem:[%s0 + $0x68] sm:$0xff]
  %v28 = vld [vmem:[%s0 + $0x70] sm:$0xff]
  %v29 = vld [vmem:[%s0 + $0x78] sm:$0xff]
  %v30 = vld [vmem:[%s1] sm:$0xff]
  %v31 = vld [vmem:[%s1 + $0x8] sm:$0xff]
  %v32 = vld [vmem:[%s1 + $0x10] sm:$0xff]
  %v33 = vld [vmem:[%s1 + $0x18] sm:$0xff]
  %v34 = vld [vmem:[%s2] sm:$0x1]
  %v36 = vlaneseq
  %v37 = vshrl.u32 %v36, 7
  %v38 = vsub.s32 0, %v37
  %v39 = vrot.slane %v34, %v38
  %vm41 = vcmask 261120
  %v43 = vsel %vm41, %v14, 0
  %v46 = vsel %vm41, %v15, 0
  %v49 = vsel %vm41, %v16, 0
  %v52 = vsel %vm41, %v17, 0
  %v55 = vsel %vm41, %v18, 0
  %v58 = vsel %vm41, %v19, 0
  %v61 = vsel %vm41, %v20, 0
  %v64 = vsel %vm41, %v21, 0
  %v67 = vsel %vm41, %v22, 0
  %v70 = vsel %vm41, %v23, 0
  %v73 = vsel %vm41, %v24, 0
  %v76 = vsel %vm41, %v25, 0
  %v79 = vsel %vm41, %v26, 0
  %v82 = vsel %vm41, %v27, 0
  %v85 = vsel %vm41, %v28, 0
  %v88 = vsel %vm41, %v29, 0
  %90 = vmatprep.subr.mxu0 0.0
  %91 = vmatpush1.msra.mxu0 %v30
  %92 = vmatprep.subr.mxu0 0.0
  %93 = vmatpush1.msra.mxu0 %v31
  %94 = vmatprep.subr.mxu0 0.0
  %95 = vmatpush1.msra.mxu0 %v32
  %96 = vmatprep.subr.mxu0 0.0
  %97 = vmatpush1.msra.mxu0 %v33
  %98 = vmatprep.subr.mxu0 0.0
  %99 = vmatpush1.msra.mxu0 0.0
  %100 = vmatprep.subr.mxu0 0.0
  %101 = vmatpush1.msra.mxu0 0.0
  %102 = vmatprep.subr.mxu0 0.0
  %103 = vmatpush1.msra.mxu0 0.0
  %104 = vmatprep.subr.mxu0 0.0
  %105 = vmatpush1.msra.mxu0 0.0
  %106 = vmatprep.subr.mxu0 0.0
  %107 = vmatpush1.msra.mxu0 0.0
  %108 = vmatprep.subr.mxu0 0.0
  %109 = vmatpush1.msra.mxu0 0.0
  %110 = vmatprep.subr.mxu0 0.0
  %111 = vmatpush1.msra.mxu0 0.0
  %112 = vmatprep.subr.mxu0 0.0
  %113 = vmatpush1.msra.mxu0 0.0
  %114 = vmatprep.subr.mxu0 0.0
  %115 = vmatpush1.msra.mxu0 0.0
  %116 = vmatprep.subr.mxu0 0.0
  %117 = vmatpush1.msra.mxu0 0.0
  %118 = vmatprep.subr.mxu0 0.0
  %119 = vmatpush1.msra.mxu0 0.0
  %120 = vmatprep.subr.mxu0 0.0
  %121 = vmatpush1.msra.mxu0 0.0
  %122 = vmatprep.subr.mxu0 0.0
  %123 = vmatpush1.msra.mxu0 0.0
  %124 = vmatprep.subr.mxu0 0.0
  %125 = vmatpush1.msra.mxu0 0.0
  %126 = vmatprep.subr.mxu0 0.0
  %127 = vmatpush1.msra.mxu0 0.0
  %128 = vmatprep.subr.mxu0 0.0
  %129 = vmatpush1.msra.mxu0 0.0
  %130 = vmatprep.subr.mxu0 0.0
  %131 = vmatpush1.msra.mxu0 0.0
  %132 = vmatprep.subr.mxu0 0.0
  %133 = vmatpush1.msra.mxu0 0.0
  %134 = vmatprep.subr.mxu0 0.0
  %135 = vmatpush1.msra.mxu0 0.0
  %136 = vmatprep.subr.mxu0 0.0
  %137 = vmatpush1.msra.mxu0 0.0
  %138 = vmatprep.subr.mxu0 0.0
  %139 = vmatpush1.msra.mxu0 0.0
  %140 = vmatprep.subr.mxu0 0.0
  %141 = vmatpush1.msra.mxu0 0.0
  %142 = vmatprep.subr.mxu0 0.0
  %143 = vmatpush1.msra.mxu0 0.0
  %144 = vmatprep.subr.mxu0 0.0
  %145 = vmatpush1.msra.mxu0 0.0
  %146 = vmatprep.subr.mxu0 0.0
  %147 = vmatpush1.msra.mxu0 0.0
  %148 = vmatprep.subr.mxu0 0.0
  %149 = vmatpush1.msra.mxu0 0.0
  %150 = vmatprep.subr.mxu0 0.0
  %151 = vmatpush1.msra.mxu0 0.0
  %152 = vmatprep.subr.mxu0 0.0
  %153 = vmatpush1.msra.mxu0 0.0
  %154 = vmatprep.mubr.f32.mxu0 0.0
  %155 = vmatmul.mubr.f32.gmra.mrb[0].mxu0 %v43
  %v156 = vpop.f32.mrb[0].mxu0
  %v157 = vadd.f32 %v39, %v156
  %v158 = vpop.f32.mrb[0].mxu0
  %159 = vmatprep.mubr.f32.mxu0 0.0
  %160 = vmatmul.mubr.f32.gmra.mrb[0].mxu0 %v46
  %v161 = vpop.f32.mrb[0].mxu0
  %v162 = vadd.f32 %v39, %v161
  %v163 = vpop.f32.mrb[0].mxu0
  %164 = vmatprep.mubr.f32.mxu0 0.0
  %165 = vmatmul.mubr.f32.gmra.mrb[0].mxu0 %v49
  %v166 = vpop.f32.mrb[0].mxu0
  %v167 = vadd.f32 %v39, %v166
  %v168 = vpop.f32.mrb[0].mxu0
  %169 = vmatprep.mubr.f32.mxu0 0.0
  %170 = vmatmul.mubr.f32.gmra.mrb[0].mxu0 %v52
  %v171 = vpop.f32.mrb[0].mxu0
  %v172 = vadd.f32 %v39, %v171
  %v173 = vpop.f32.mrb[0].mxu0
  %174 = vmatprep.mubr.f32.mxu0 0.0
  %175 = vmatmul.mubr.f32.gmra.mrb[0].mxu0 %v55
  %v176 = vpop.f32.mrb[0].mxu0
  %v177 = vadd.f32 %v39, %v176
  %v178 = vpop.f32.mrb[0].mxu0
  %179 = vmatprep.mubr.f32.mxu0 0.0
  %180 = vmatmul.mubr.f32.gmra.mrb[0].mxu0 %v58
  %v181 = vpop.f32.mrb[0].mxu0
  %v182 = vadd.f32 %v39, %v181
  %v183 = vpop.f32.mrb[0].mxu0
  %184 = vmatprep.mubr.f32.mxu0 0.0
  %185 = vmatmul.mubr.f32.gmra.mrb[0].mxu0 %v61
  %v186 = vpop.f32.mrb[0].mxu0
  %v187 = vadd.f32 %v39, %v186
  %v188 = vpop.f32.mrb[0].mxu0
  %189 = vmatprep.mubr.f32.mxu0 0.0
  %190 = vmatmul.mubr.f32.gmra.mrb[0].mxu0 %v64
  %v191 = vpop.f32.mrb[0].mxu0
  %v192 = vadd.f32 %v39, %v191
  %v193 = vpop.f32.mrb[0].mxu0
  %194 = vmatprep.mubr.f32.mxu0 0.0
  %195 = vmatmul.mubr.f32.gmra.mrb[0].mxu0 %v67
  %v196 = vpop.f32.mrb[0].mxu0
  %v197 = vadd.f32 %v39, %v196
  %v198 = vpop.f32.mrb[0].mxu0
  %199 = vmatprep.mubr.f32.mxu0 0.0
  %200 = vmatmul.mubr.f32.gmra.mrb[0].mxu0 %v70
  %v201 = vpop.f32.mrb[0].mxu0
  %v202 = vadd.f32 %v39, %v201
  %v203 = vpop.f32.mrb[0].mxu0
  %204 = vmatprep.mubr.f32.mxu0 0.0
  %205 = vmatmul.mubr.f32.gmra.mrb[0].mxu0 %v73
  %v206 = vpop.f32.mrb[0].mxu0
  %v207 = vadd.f32 %v39, %v206
  %v208 = vpop.f32.mrb[0].mxu0
  %209 = vmatprep.mubr.f32.mxu0 0.0
  %210 = vmatmul.mubr.f32.gmra.mrb[0].mxu0 %v76
  %v211 = vpop.f32.mrb[0].mxu0
  %v212 = vadd.f32 %v39, %v211
  %v213 = vpop.f32.mrb[0].mxu0
  %214 = vmatprep.mubr.f32.mxu0 0.0
  %215 = vmatmul.mubr.f32.gmra.mrb[0].mxu0 %v79
  %v216 = vpop.f32.mrb[0].mxu0
  %v217 = vadd.f32 %v39, %v216
  %v218 = vpop.f32.mrb[0].mxu0
  %219 = vmatprep.mubr.f32.mxu0 0.0
  %220 = vmatmul.mubr.f32.gmra.mrb[0].mxu0 %v82
  %v221 = vpop.f32.mrb[0].mxu0
  %v222 = vadd.f32 %v39, %v221
  %v223 = vpop.f32.mrb[0].mxu0
  %224 = vmatprep.mubr.f32.mxu0 0.0
  %225 = vmatmul.mubr.f32.gmra.mrb[0].mxu0 %v85
  %v226 = vpop.f32.mrb[0].mxu0
  %v227 = vadd.f32 %v39, %v226
  %v228 = vpop.f32.mrb[0].mxu0
  %229 = vmatprep.mubr.f32.mxu0 0.0
  %230 = vmatmul.mubr.f32.gmra.mrb[0].mxu0 %v88
  %v231 = vpop.f32.mrb[0].mxu0
  %v232 = vadd.f32 %v39, %v231
  %v233 = vpop.f32.mrb[0].mxu0
  %234 = vdwg.mxu0
  %v235 = vmax.f32 %v157, 0.0
  %v236 = vmax.f32 %v162, 0.0
  %v237 = vmax.f32 %v167, 0.0
  %v238 = vmax.f32 %v172, 0.0
  %v239 = vmax.f32 %v177, 0.0
  %v240 = vmax.f32 %v182, 0.0
  %v241 = vmax.f32 %v187, 0.0
  %v242 = vmax.f32 %v192, 0.0
  %v243 = vmax.f32 %v197, 0.0
  %v244 = vmax.f32 %v202, 0.0
  %v245 = vmax.f32 %v207, 0.0
  %v246 = vmax.f32 %v212, 0.0
  %v247 = vmax.f32 %v217, 0.0
  %v248 = vmax.f32 %v222, 0.0
  %v249 = vmax.f32 %v227, 0.0
  %v250 = vmax.f32 %v232, 0.0
  %vm251 = vcmask 195584
  %252 = vst.msk [vmem:[%s3] sm:$0xff] %vm251, %v235
  %253 = vst.msk [vmem:[%s3 + $0x8] sm:$0xff] %vm251, %v236
  %254 = vst.msk [vmem:[%s3 + $0x10] sm:$0xff] %vm251, %v237
  %255 = vst.msk [vmem:[%s3 + $0x18] sm:$0xff] %vm251, %v238
  %256 = vst.msk [vmem:[%s3 + $0x20] sm:$0xff] %vm251, %v239
  %257 = vst.msk [vmem:[%s3 + $0x28] sm:$0xff] %vm251, %v240
  %258 = vst.msk [vmem:[%s3 + $0x30] sm:$0xff] %vm251, %v241
  %259 = vst.msk [vmem:[%s3 + $0x38] sm:$0xff] %vm251, %v242
  %260 = vst.msk [vmem:[%s3 + $0x40] sm:$0xff] %vm251, %v243
  %261 = vst.msk [vmem:[%s3 + $0x48] sm:$0xff] %vm251, %v244
  %262 = vst.msk [vmem:[%s3 + $0x50] sm:$0xff] %vm251, %v245
  %263 = vst.msk [vmem:[%s3 + $0x58] sm:$0xff] %vm251, %v246
  %264 = vst.msk [vmem:[%s3 + $0x60] sm:$0xff] %vm251, %v247
  %265 = vst.msk [vmem:[%s3 + $0x68] sm:$0xff] %vm251, %v248
  %266 = vst.msk [vmem:[%s3 + $0x70] sm:$0xff] %vm251, %v249
  %267 = vst.msk [vmem:[%s3 + $0x78] sm:$0xff] %vm251, %v250
  // Predicated region
  $region14: #{db_cnn_forward.2} parent=0 // pred_check
    _
  $region15: #{db_cnn_forward.2} parent=0 // pred_check_branch
    %269 = sbr.rel (0) target = $region17
  $region16: #{db_cnn_forward.2} parent=0 // pred_region
    _
  $region17: #{db_cnn_forward.2} parent=0 // pred_fallthru
    _
  // Predicated region
  $region18: #{db_cnn_forward.2} parent=0 // pred_check
    _
  $region19: #{db_cnn_forward.2} parent=0 // pred_check_branch
    %271 = sbr.rel (0) target = $region21
  $region20: #{db_cnn_forward.2} parent=0 // pred_region
    _
  $region21: #{db_cnn_forward.2} parent=0 // pred_fallthru
    _

// kernel: db_cnn_forward.3
$region0: #{db_cnn_forward.3}
  #allocation0 [shape = 'u32[]', space=smem, size = 0x4, offset = 0x4, fixed_abs, tag = 'smem constant byte address 0x4 - core index']
  #allocation1 [shape = 'u32[144,128]{1,0:T(1,128)}', space=vmem, size = 0x12000, scoped, tag = 'internal scratch']
  #allocation2 [shape = 'f32[1,1]{1,0:T(1,128)S(1)}', space=vmem, size = 0x200, scoped, tag = 'scoped memory for db_cnn_forward.3']
  %s0 = inlined_call_operand.vmem [shape: f32[2,1536], index: 0, kind: input, shape index: {}]
  %s1 = inlined_call_operand.vmem [shape: bf16[1536,256], index: 1, kind: input, shape index: {}]
  %s2 = inlined_call_operand.vmem [shape: f32[128,256], index: 2, kind: input, shape index: {}]
  %s3 = inlined_call_operand.vmem [shape: f32[256,128], index: 3, kind: input, shape index: {}]
  %s4 = inlined_call_operand.vmem [shape: f32[1,128], index: 4, kind: input, shape index: {}]
  %s5 = inlined_call_operand.vmem [shape: f32[1,128], index: 5, kind: input, shape index: {}]
  %s6 = inlined_call_operand.vmem [shape: f32[1,128], index: 6, kind: input, shape index: {}]
  %s7 = inlined_call_operand.<no memory space> [shape: f32[1,1], index: 7, kind: input, shape index: {}]
  %s8 = inlined_call_operand.vmem [shape: s32[2,128], index: 8, kind: input, shape index: {}]
  %s9 = inlined_call_operand.vmem [shape: f32[2,1], index: 9, kind: output, shape index: {}]
  %s10 = sld [smem:[#allocation0]]
  $region46: #{db_cnn_forward.3} parent=0
    _
  %s12 = ssub.s32 1, %s10
  %s13 = scalar_select 0, %s12, %s10
  %v14 = vstv %s7
  %15 = vst [vmem:[#allocation2] sm:$0x1] %v14
  // Predicated region
  $region2: #{db_cnn_forward.3} parent=0 // pred_check
    _
  $region3: #{db_cnn_forward.3} parent=0 // pred_check_branch
    %17 = sbr.rel (0) target = $region5
  $region4: #{db_cnn_forward.3} parent=0 // pred_region
    _
  $region5: #{db_cnn_forward.3} parent=0 // pred_fallthru
    _
  // Predicated region
  $region6: #{db_cnn_forward.3} parent=0 // pred_check
    _
  $region7: #{db_cnn_forward.3} parent=0 // pred_check_branch
    %19 = sbr.rel (0) target = $region9
  $region8: #{db_cnn_forward.3} parent=0 // pred_region
    _
  $region9: #{db_cnn_forward.3} parent=0 // pred_fallthru
    _
  // Predicated region
  $region10: #{db_cnn_forward.3} parent=0 // pred_check
    _
  $region11: #{db_cnn_forward.3} parent=0 // pred_check_branch
    %21 = sbr.rel (0) target = $region13
  $region12: #{db_cnn_forward.3} parent=0 // pred_region
    _
  $region13: #{db_cnn_forward.3} parent=0 // pred_fallthru
    _
  // Predicated region
  $region14: #{db_cnn_forward.3} parent=0 // pred_check
    _
  $region15: #{db_cnn_forward.3} parent=0 // pred_check_branch
    %23 = sbr.rel (0) target = $region17
  $region16: #{db_cnn_forward.3} parent=0 // pred_region
    _
  $region17: #{db_cnn_forward.3} parent=0 // pred_fallthru
    _
  // Predicated region
  $region18: #{db_cnn_forward.3} parent=0 // pred_check
    _
  $region19: #{db_cnn_forward.3} parent=0 // pred_check_branch
    %25 = sbr.rel (0) target = $region21
  $region20: #{db_cnn_forward.3} parent=0 // pred_region
    _
  $region21: #{db_cnn_forward.3} parent=0 // pred_fallthru
    _
  // Predicated region
  $region22: #{db_cnn_forward.3} parent=0 // pred_check
    _
  $region23: #{db_cnn_forward.3} parent=0 // pred_check_branch
    %27 = sbr.rel (0) target = $region25
  $region24: #{db_cnn_forward.3} parent=0 // pred_region
    _
  $region25: #{db_cnn_forward.3} parent=0 // pred_fallthru
    _
  // Predicated region
  $region26: #{db_cnn_forward.3} parent=0 // pred_check
    _
  $region27: #{db_cnn_forward.3} parent=0 // pred_check_branch
    %29 = sbr.rel (0) target = $region29
  $region28: #{db_cnn_forward.3} parent=0 // pred_region
    _
  $region29: #{db_cnn_forward.3} parent=0 // pred_fallthru
    _
  // Predicated region
  $region30: #{db_cnn_forward.3} parent=0 // pred_check
    _
  $region31: #{db_cnn_forward.3} parent=0 // pred_check_branch
    %31 = sbr.rel (0) target = $region33
  $region32: #{db_cnn_forward.3} parent=0 // pred_region
    _
  $region33: #{db_cnn_forward.3} parent=0 // pred_fallthru
    _
  // Predicated region
  $region34: #{db_cnn_forward.3} parent=0 // pred_check
    _
  $region35: #{db_cnn_forward.3} parent=0 // pred_check_branch
    %33 = sbr.rel (0) target = $region37
  $region36: #{db_cnn_forward.3} parent=0 // pred_region
    _
  $region37: #{db_cnn_forward.3} parent=0 // pred_fallthru
    _
  %v34 = vld [vmem:[%s0] sm:$0xff]
  %v35 = vld [vmem:[%s0 + $0x8] sm:$0xff]
  %v36 = vld [vmem:[%s0 + $0x10] sm:$0xff]
  %v40 = vcombine.high %v34, %v34
  %v42 = vunpack.c.l.s4 1983009808
  %v43 = vunpack.c.0.s8 %v42
  %v44 = vlaneseq
  %v45 = vshrl.u32 %v44, 7
  %v46 = vsub.s32 %v43, %v45
  %v47 = vrot.slane %v34, %v46
  %v49 = vunpack.c.l.s4 1983009808
  %v50 = vunpack.c.0.s8 %v49
  %v51 = vlaneseq
  %v52 = vshrl.u32 %v51, 7
  %v53 = vsub.s32 %v50, %v52
  %v54 = vrot.slane %v40, %v53
  %v55 = vcombine.high %v47, %v47
  %v56 = vcombine.high %v54, %v54
  %v57 = vcombine.high %v35, %v35
  %v59 = vunpack.c.l.s4 1983009808
  %v60 = vunpack.c.0.s8 %v59
  %v61 = vlaneseq
  %v62 = vshrl.u32 %v61, 7
  %v63 = vsub.s32 %v60, %v62
  %v64 = vrot.slane %v35, %v63
  %v66 = vunpack.c.l.s4 1983009808
  %v67 = vunpack.c.0.s8 %v66
  %v68 = vlaneseq
  %v69 = vshrl.u32 %v68, 7
  %v70 = vsub.s32 %v67, %v69
  %v71 = vrot.slane %v57, %v70
  %v72 = vcombine.high %v64, %v64
  %v73 = vcombine.high %v71, %v71
  %v74 = vcombine.high %v36, %v36
  %v76 = vunpack.c.l.s4 1983009808
  %v77 = vunpack.c.0.s8 %v76
  %v78 = vlaneseq
  %v79 = vshrl.u32 %v78, 7
  %v80 = vsub.s32 %v77, %v79
  %v81 = vrot.slane %v36, %v80
  %v83 = vunpack.c.l.s4 1983009808
  %v84 = vunpack.c.0.s8 %v83
  %v85 = vlaneseq
  %v86 = vshrl.u32 %v85, 7
  %v87 = vsub.s32 %v84, %v86
  %v88 = vrot.slane %v74, %v87
  %v89 = vcombine.high %v81, %v81
  %v90 = vcombine.high %v88, %v88
  %v103 = vpack.c.bf16 %v47, %v47
  %v104 = vpack.c.bf16 %v55, %v55
  %v105 = vpack.c.bf16 %v54, %v54
  %v106 = vpack.c.bf16 %v56, %v56
  %v107 = vpack.c.bf16 %v64, %v64
  %v108 = vpack.c.bf16 %v72, %v72
  %v109 = vpack.c.bf16 %v71, %v71
  %v110 = vpack.c.bf16 %v73, %v73
  %v111 = vpack.c.bf16 %v81, %v81
  %v112 = vpack.c.bf16 %v89, %v89
  %v113 = vpack.c.bf16 %v88, %v88
  %v114 = vpack.c.bf16 %v90, %v90
  %v115 = vld [vmem:[%s1] sm:$0xff]
  %v116 = vld [vmem:[%s1 + $0x8] sm:$0xff]
  %v117 = vld [vmem:[%s1 + $0x10] sm:$0xff]
  %v118 = vld [vmem:[%s1 + $0x18] sm:$0xff]
  %v119 = vld [vmem:[%s1 + $0x20] sm:$0xff]
  %v120 = vld [vmem:[%s1 + $0x28] sm:$0xff]
  %v121 = vld [vmem:[%s1 + $0x30] sm:$0xff]
  %v122 = vld [vmem:[%s1 + $0x38] sm:$0xff]
  %v123 = vld [vmem:[%s1 + $0x40] sm:$0xff]
  %v124 = vld [vmem:[%s1 + $0x48] sm:$0xff]
  %v125 = vld [vmem:[%s1 + $0x50] sm:$0xff]
  %v126 = vld [vmem:[%s1 + $0x58] sm:$0xff]
  %v127 = vld [vmem:[%s1 + $0x60] sm:$0xff]
  %v128 = vld [vmem:[%s1 + $0x68] sm:$0xff]
  %v129 = vld [vmem:[%s1 + $0x70] sm:$0xff]
  %v130 = vld [vmem:[%s1 + $0x78] sm:$0xff]
  %v131 = vld [vmem:[%s1 + $0x80] sm:$0xff]
  %v132 = vld [vmem:[%s1 + $0x88] sm:$0xff]
  %v133 = vld [vmem:[%s1 + $0x90] sm:$0xff]
  %v134 = vld [vmem:[%s1 + $0x98] sm:$0xff]
  %v135 = vld [vmem:[%s1 + $0xa0] sm:$0xff]
  %v136 = vld [vmem:[%s1 + $0xa8] sm:$0xff]
  %v137 = vld [vmem:[%s1 + $0xb0] sm:$0xff]
  %v138 = vld [vmem:[%s1 + $0xb8] sm:$0xff]
  %v139 = vld [vmem:[%s1 + $0xc0] sm:$0xff]
  %v140 = vld [vmem:[%s1 + $0xc8] sm:$0xff]
  %v141 = vld [vmem:[%s1 + $0xd0] sm:$0xff]
  %v142 = vld [vmem:[%s1 + $0xd8] sm:$0xff]
  %v143 = vld [vmem:[%s1 + $0xe0] sm:$0xff]
  %v144 = vld [vmem:[%s1 + $0xe8] sm:$0xff]
  %v145 = vld [vmem:[%s1 + $0xf0] sm:$0xff]
  %v146 = vld [vmem:[%s1 + $0xf8] sm:$0xff]
  %v147 = vld [vmem:[%s1 + $0x100] sm:$0xff]
  %v148 = vld [vmem:[%s1 + $0x108] sm:$0xff]
  %v149 = vld [vmem:[%s1 + $0x110] sm:$0xff]
  %v150 = vld [vmem:[%s1 + $0x118] sm:$0xff]
  %v151 = vld [vmem:[%s1 + $0x120] sm:$0xff]
  %v152 = vld [vmem:[%s1 + $0x128] sm:$0xff]
  %v153 = vld [vmem:[%s1 + $0x130] sm:$0xff]
  %v154 = vld [vmem:[%s1 + $0x138] sm:$0xff]
  %v155 = vld [vmem:[%s1 + $0x140] sm:$0xff]
  %v156 = vld [vmem:[%s1 + $0x148] sm:$0xff]
  %v157 = vld [vmem:[%s1 + $0x150] sm:$0xff]
  %v158 = vld [vmem:[%s1 + $0x158] sm:$0xff]
  %v159 = vld [vmem:[%s1 + $0x160] sm:$0xff]
  %v160 = vld [vmem:[%s1 + $0x168] sm:$0xff]
  %v161 = vld [vmem:[%s1 + $0x170] sm:$0xff]
  %v162 = vld [vmem:[%s1 + $0x178] sm:$0xff]
  %v163 = vld [vmem:[%s1 + $0x180] sm:$0xff]
  %v164 = vld [vmem:[%s1 + $0x188] sm:$0xff]
  %v165 = vld [vmem:[%s1 + $0x190] sm:$0xff]
  %v166 = vld [vmem:[%s1 + $0x198] sm:$0xff]
  %v167 = vld [vmem:[%s1 + $0x1a0] sm:$0xff]
  %v168 = vld [vmem:[%s1 + $0x1a8] sm:$0xff]
  %v169 = vld [vmem:[%s1 + $0x1b0] sm:$0xff]
  %v170 = vld [vmem:[%s1 + $0x1b8] sm:$0xff]
  %v171 = vld [vmem:[%s1 + $0x1c0] sm:$0xff]
  %v172 = vld [vmem:[%s1 + $0x1c8] sm:$0xff]
  %v173 = vld [vmem:[%s1 + $0x1d0] sm:$0xff]
  %v174 = vld [vmem:[%s1 + $0x1d8] sm:$0xff]
  %v175 = vld [vmem:[%s1 + $0x1e0] sm:$0xff]
  %v176 = vld [vmem:[%s1 + $0x1e8] sm:$0xff]
  %v177 = vld [vmem:[%s1 + $0x1f0] sm:$0xff]
  %v178 = vld [vmem:[%s1 + $0x1f8] sm:$0xff]
  %v179 = vld [vmem:[%s1 + $0x200] sm:$0xff]
  %v180 = vld [vmem:[%s1 + $0x208] sm:$0xff]
  %v181 = vld [vmem:[%s1 + $0x210] sm:$0xff]
  %v182 = vld [vmem:[%s1 + $0x218] sm:$0xff]
  %v183 = vld [vmem:[%s1 + $0x220] sm:$0xff]
  %v184 = vld [vmem:[%s1 + $0x228] sm:$0xff]
  %v185 = vld [vmem:[%s1 + $0x230] sm:$0xff]
  %v186 = vld [vmem:[%s1 + $0x238] sm:$0xff]
  %v187 = vld [vmem:[%s1 + $0x240] sm:$0xff]
  %v188 = vld [vmem:[%s1 + $0x248] sm:$0xff]
  %v189 = vld [vmem:[%s1 + $0x250] sm:$0xff]
  %v190 = vld [vmem:[%s1 + $0x258] sm:$0xff]
  %v191 = vld [vmem:[%s1 + $0x260] sm:$0xff]
  %v192 = vld [vmem:[%s1 + $0x268] sm:$0xff]
  %v193 = vld [vmem:[%s1 + $0x270] sm:$0xff]
  %v194 = vld [vmem:[%s1 + $0x278] sm:$0xff]
  %v195 = vld [vmem:[%s1 + $0x280] sm:$0xff]
  %v196 = vld [vmem:[%s1 + $0x288] sm:$0xff]
  %v197 = vld [vmem:[%s1 + $0x290] sm:$0xff]
  %v198 = vld [vmem:[%s1 + $0x298] sm:$0xff]
  %v199 = vld [vmem:[%s1 + $0x2a0] sm:$0xff]
  %v200 = vld [vmem:[%s1 + $0x2a8] sm:$0xff]
  %v201 = vld [vmem:[%s1 + $0x2b0] sm:$0xff]
  %v202 = vld [vmem:[%s1 + $0x2b8] sm:$0xff]
  %v203 = vld [vmem:[%s1 + $0x2c0] sm:$0xff]
  %v204 = vld [vmem:[%s1 + $0x2c8] sm:$0xff]
  %v205 = vld [vmem:[%s1 + $0x2d0] sm:$0xff]
  %v206 = vld [vmem:[%s1 + $0x2d8] sm:$0xff]
  %v207 = vld [vmem:[%s1 + $0x2e0] sm:$0xff]
  %v208 = vld [vmem:[%s1 + $0x2e8] sm:$0xff]
  %v209 = vld [vmem:[%s1 + $0x2f0] sm:$0xff]
  %v210 = vld [vmem:[%s1 + $0x2f8] sm:$0xff]
  %v211 = vld [vmem:[%s1 + $0x300] sm:$0xff]
  %v212 = vld [vmem:[%s1 + $0x308] sm:$0xff]
  %v213 = vld [vmem:[%s1 + $0x310] sm:$0xff]
  %v214 = vld [vmem:[%s1 + $0x318] sm:$0xff]
  %v215 = vld [vmem:[%s1 + $0x320] sm:$0xff]
  %v216 = vld [vmem:[%s1 + $0x328] sm:$0xff]
  %v217 = vld [vmem:[%s1 + $0x330] sm:$0xff]
  %v218 = vld [vmem:[%s1 + $0x338] sm:$0xff]
  %v219 = vld [vmem:[%s1 + $0x340] sm:$0xff]
  %v220 = vld [vmem:[%s1 + $0x348] sm:$0xff]
  %v221 = vld [vmem:[%s1 + $0x350] sm:$0xff]
  %v222 = vld [vmem:[%s1 + $0x358] sm:$0xff]
  %v223 = vld [vmem:[%s1 + $0x360] sm:$0xff]
  %v224 = vld [vmem:[%s1 + $0x368] sm:$0xff]
  %v225 = vld [vmem:[%s1 + $0x370] sm:$0xff]
  %v226 = vld [vmem:[%s1 + $0x378] sm:$0xff]
  %v227 = vld [vmem:[%s1 + $0x380] sm:$0xff]
  %v228 = vld [vmem:[%s1 + $0x388] sm:$0xff]
  %v229 = vld [vmem:[%s1 + $0x390] sm:$0xff]
  %v230 = vld [vmem:[%s1 + $0x398] sm:$0xff]
  %v231 = vld [vmem:[%s1 + $0x3a0] sm:$0xff]
  %v232 = vld [vmem:[%s1 + $0x3a8] sm:$0xff]
  %v233 = vld [vmem:[%s1 + $0x3b0] sm:$0xff]
  %v234 = vld [vmem:[%s1 + $0x3b8] sm:$0xff]
  %v235 = vld [vmem:[%s1 + $0x3c0] sm:$0xff]
  %v236 = vld [vmem:[%s1 + $0x3c8] sm:$0xff]
  %v237 = vld [vmem:[%s1 + $0x3d0] sm:$0xff]
  %v238 = vld [vmem:[%s1 + $0x3d8] sm:$0xff]
  %v239 = vld [vmem:[%s1 + $0x3e0] sm:$0xff]
  %v240 = vld [vmem:[%s1 + $0x3e8] sm:$0xff]
  %v241 = vld [vmem:[%s1 + $0x3f0] sm:$0xff]
  %v242 = vld [vmem:[%s1 + $0x3f8] sm:$0xff]
  %v243 = vld [vmem:[%s1 + $0x400] sm:$0xff]
  %v244 = vld [vmem:[%s1 + $0x408] sm:$0xff]
  %v245 = vld [vmem:[%s1 + $0x410] sm:$0xff]
  %v246 = vld [vmem:[%s1 + $0x418] sm:$0xff]
  %v247 = vld [vmem:[%s1 + $0x420] sm:$0xff]
  %v248 = vld [vmem:[%s1 + $0x428] sm:$0xff]
  %v249 = vld [vmem:[%s1 + $0x430] sm:$0xff]
  %v250 = vld [vmem:[%s1 + $0x438] sm:$0xff]
  %v251 = vld [vmem:[%s1 + $0x440] sm:$0xff]
  %v252 = vld [vmem:[%s1 + $0x448] sm:$0xff]
  %v253 = vld [vmem:[%s1 + $0x450] sm:$0xff]
  %v254 = vld [vmem:[%s1 + $0x458] sm:$0xff]
  %v255 = vld [vmem:[%s1 + $0x460] sm:$0xff]
  %v256 = vld [vmem:[%s1 + $0x468] sm:$0xff]
  %v257 = vld [vmem:[%s1 + $0x470] sm:$0xff]
  %v258 = vld [vmem:[%s1 + $0x478] sm:$0xff]
  %v259 = vld [vmem:[%s1 + $0x480] sm:$0xff]
  %v260 = vld [vmem:[%s1 + $0x488] sm:$0xff]
  %v261 = vld [vmem:[%s1 + $0x490] sm:$0xff]
  %v262 = vld [vmem:[%s1 + $0x498] sm:$0xff]
  %v263 = vld [vmem:[%s1 + $0x4a0] sm:$0xff]
  %v264 = vld [vmem:[%s1 + $0x4a8] sm:$0xff]
  %v265 = vld [vmem:[%s1 + $0x4b0] sm:$0xff]
  %v266 = vld [vmem:[%s1 + $0x4b8] sm:$0xff]
  %v267 = vld [vmem:[%s1 + $0x4c0] sm:$0xff]
  %v268 = vld [vmem:[%s1 + $0x4c8] sm:$0xff]
  %v269 = vld [vmem:[%s1 + $0x4d0] sm:$0xff]
  %v270 = vld [vmem:[%s1 + $0x4d8] sm:$0xff]
  %v271 = vld [vmem:[%s1 + $0x4e0] sm:$0xff]
  %v272 = vld [vmem:[%s1 + $0x4e8] sm:$0xff]
  %v273 = vld [vmem:[%s1 + $0x4f0] sm:$0xff]
  %v274 = vld [vmem:[%s1 + $0x4f8] sm:$0xff]
  %v275 = vld [vmem:[%s1 + $0x500] sm:$0xff]
  %v276 = vld [vmem:[%s1 + $0x508] sm:$0xff]
  %v277 = vld [vmem:[%s1 + $0x510] sm:$0xff]
  %v278 = vld [vmem:[%s1 + $0x518] sm:$0xff]
  %v279 = vld [vmem:[%s1 + $0x520] sm:$0xff]
  %v280 = vld [vmem:[%s1 + $0x528] sm:$0xff]
  %v281 = vld [vmem:[%s1 + $0x530] sm:$0xff]
  %v282 = vld [vmem:[%s1 + $0x538] sm:$0xff]
  %v283 = vld [vmem:[%s1 + $0x540] sm:$0xff]
  %v284 = vld [vmem:[%s1 + $0x548] sm:$0xff]
  %v285 = vld [vmem:[%s1 + $0x550] sm:$0xff]
  %v286 = vld [vmem:[%s1 + $0x558] sm:$0xff]
  %v287 = vld [vmem:[%s1 + $0x560] sm:$0xff]
  %v288 = vld [vmem:[%s1 + $0x568] sm:$0xff]
  %v289 = vld [vmem:[%s1 + $0x570] sm:$0xff]
  %v290 = vld [vmem:[%s1 + $0x578] sm:$0xff]
  %v291 = vld [vmem:[%s1 + $0x580] sm:$0xff]
  %v292 = vld [vmem:[%s1 + $0x588] sm:$0xff]
  %v293 = vld [vmem:[%s1 + $0x590] sm:$0xff]
  %v294 = vld [vmem:[%s1 + $0x598] sm:$0xff]
  %v295 = vld [vmem:[%s1 + $0x5a0] sm:$0xff]
  %v296 = vld [vmem:[%s1 + $0x5a8] sm:$0xff]
  %v297 = vld [vmem:[%s1 + $0x5b0] sm:$0xff]
  %v298 = vld [vmem:[%s1 + $0x5b8] sm:$0xff]
  %v299 = vld [vmem:[%s1 + $0x5c0] sm:$0xff]
  %v300 = vld [vmem:[%s1 + $0x5c8] sm:$0xff]
  %v301 = vld [vmem:[%s1 + $0x5d0] sm:$0xff]
  %v302 = vld [vmem:[%s1 + $0x5d8] sm:$0xff]
  %v303 = vld [vmem:[%s1 + $0x5e0] sm:$0xff]
  %v304 = vld [vmem:[%s1 + $0x5e8] sm:$0xff]
  %v305 = vld [vmem:[%s1 + $0x5f0] sm:$0xff]
  %v306 = vld [vmem:[%s1 + $0x5f8] sm:$0xff]
  %v499 = vunpack.c.l.b16 %v115
  %v500 = vunpack.c.h.b16 %v115
  %v501 = vunpack.c.l.b16 %v116
  %v502 = vunpack.c.h.b16 %v116
  %v503 = vunpack.c.l.b16 %v117
  %v504 = vunpack.c.h.b16 %v117
  %v505 = vunpack.c.l.b16 %v118
  %v506 = vunpack.c.h.b16 %v118
  %v507 = vunpack.c.l.b16 %v119
  %v508 = vunpack.c.h.b16 %v119
  %v509 = vunpack.c.l.b16 %v120
  %v510 = vunpack.c.h.b16 %v120
  %v511 = vunpack.c.l.b16 %v121
  %v512 = vunpack.c.h.b16 %v121
  %v513 = vunpack.c.l.b16 %v122
  %v514 = vunpack.c.h.b16 %v122
  %v515 = vunpack.c.l.b16 %v123
  %v516 = vunpack.c.h.b16 %v123
  %v517 = vunpack.c.l.b16 %v124
  %v518 = vunpack.c.h.b16 %v124
  %v519 = vunpack.c.l.b16 %v125
  %v520 = vunpack.c.h.b16 %v125
  %v521 = vunpack.c.l.b16 %v126
  %v522 = vunpack.c.h.b16 %v126
  %v523 = vunpack.c.l.b16 %v127
  %v524 = vunpack.c.h.b16 %v127
  %v525 = vunpack.c.l.b16 %v128
  %v526 = vunpack.c.h.b16 %v128
  %v527 = vunpack.c.l.b16 %v129
  %v528 = vunpack.c.h.b16 %v129
  %v529 = vunpack.c.l.b16 %v130
  %v530 = vunpack.c.h.b16 %v130
  %v531 = vunpack.c.l.b16 %v131
  %v532 = vunpack.c.h.b16 %v131
  %v533 = vunpack.c.l.b16 %v132
  %v534 = vunpack.c.h.b16 %v132
  %v535 = vunpack.c.l.b16 %v133
  %v536 = vunpack.c.h.b16 %v133
  %v537 = vunpack.c.l.b16 %v134
  %v538 = vunpack.c.h.b16 %v134
  %v539 = vunpack.c.l.b16 %v135
  %v540 = vunpack.c.h.b16 %v135
  %v541 = vunpack.c.l.b16 %v136
  %v542 = vunpack.c.h.b16 %v136
  %v543 = vunpack.c.l.b16 %v137
  %v544 = vunpack.c.h.b16 %v137
  %v545 = vunpack.c.l.b16 %v138
  %v546 = vunpack.c.h.b16 %v138
  %v547 = vunpack.c.l.b16 %v139
  %v548 = vunpack.c.h.b16 %v139
  %v549 = vunpack.c.l.b16 %v140
  %v550 = vunpack.c.h.b16 %v140
  %v551 = vunpack.c.l.b16 %v141
  %v552 = vunpack.c.h.b16 %v141
  %v553 = vunpack.c.l.b16 %v142
  %v554 = vunpack.c.h.b16 %v142
  %v555 = vunpack.c.l.b16 %v143
  %v556 = vunpack.c.h.b16 %v143
  %v557 = vunpack.c.l.b16 %v144
  %v558 = vunpack.c.h.b16 %v144
  %v559 = vunpack.c.l.b16 %v145
  %v560 = vunpack.c.h.b16 %v145
  %v561 = vunpack.c.l.b16 %v146
  %v562 = vunpack.c.h.b16 %v146
  %v563 = vunpack.c.l.b16 %v147
  %v564 = vunpack.c.h.b16 %v147
  %v565 = vunpack.c.l.b16 %v148
  %v566 = vunpack.c.h.b16 %v148
  %v567 = vunpack.c.l.b16 %v149
  %v568 = vunpack.c.h.b16 %v149
  %v569 = vunpack.c.l.b16 %v150
  %v570 = vunpack.c.h.b16 %v150
  %v571 = vunpack.c.l.b16 %v151
  %v572 = vunpack.c.h.b16 %v151
  %v573 = vunpack.c.l.b16 %v152
  %v574 = vunpack.c.h.b16 %v152
  %v575 = vunpack.c.l.b16 %v153
  %v576 = vunpack.c.h.b16 %v153
  %v577 = vunpack.c.l.b16 %v154
  %v578 = vunpack.c.h.b16 %v154
  %v579 = vunpack.c.l.b16 %v155
  %v580 = vunpack.c.h.b16 %v155
  %v581 = vunpack.c.l.b16 %v156
  %v582 = vunpack.c.h.b16 %v156
  %v583 = vunpack.c.l.b16 %v157
  %v584 = vunpack.c.h.b16 %v157
  %v585 = vunpack.c.l.b16 %v158
  %v586 = vunpack.c.h.b16 %v158
  %v587 = vunpack.c.l.b16 %v159
  %v588 = vunpack.c.h.b16 %v159
  %v589 = vunpack.c.l.b16 %v160
  %v590 = vunpack.c.h.b16 %v160
  %v591 = vunpack.c.l.b16 %v161
  %v592 = vunpack.c.h.b16 %v161
  %v593 = vunpack.c.l.b16 %v162
  %v594 = vunpack.c.h.b16 %v162
  %v595 = vunpack.c.l.b16 %v163
  %v596 = vunpack.c.h.b16 %v163
  %v597 = vunpack.c.l.b16 %v164
  %v598 = vunpack.c.h.b16 %v164
  %v599 = vunpack.c.l.b16 %v165
  %v600 = vunpack.c.h.b16 %v165
  %v601 = vunpack.c.l.b16 %v166
  %v602 = vunpack.c.h.b16 %v166
  %v603 = vunpack.c.l.b16 %v167
  %v604 = vunpack.c.h.b16 %v167
  %v605 = vunpack.c.l.b16 %v168
  %v606 = vunpack.c.h.b16 %v168
  %v607 = vunpack.c.l.b16 %v169
  %v608 = vunpack.c.h.b16 %v169
  %v609 = vunpack.c.l.b16 %v170
  %v610 = vunpack.c.h.b16 %v170
  %v611 = vunpack.c.l.b16 %v171
  %v612 = vunpack.c.h.b16 %v171
  %v613 = vunpack.c.l.b16 %v172
  %v614 = vunpack.c.h.b16 %v172
  %v615 = vunpack.c.l.b16 %v173
  %v616 = vunpack.c.h.b16 %v173
  %v617 = vunpack.c.l.b16 %v174
  %v618 = vunpack.c.h.b16 %v174
  %v619 = vunpack.c.l.b16 %v175
  %v620 = vunpack.c.h.b16 %v175
  %v621 = vunpack.c.l.b16 %v176
  %v622 = vunpack.c.h.b16 %v176
  %v623 = vunpack.c.l.b16 %v177
  %v624 = vunpack.c.h.b16 %v177
  %v625 = vunpack.c.l.b16 %v178
  %v626 = vunpack.c.h.b16 %v178
  %v627 = vunpack.c.l.b16 %v179
  %v628 = vunpack.c.h.b16 %v179
  %v629 = vunpack.c.l.b16 %v180
  %v630 = vunpack.c.h.b16 %v180
  %v631 = vunpack.c.l.b16 %v181
  %v632 = vunpack.c.h.b16 %v181
  %v633 = vunpack.c.l.b16 %v182
  %v634 = vunpack.c.h.b16 %v182
  %v635 = vunpack.c.l.b16 %v183
  %v636 = vunpack.c.h.b16 %v183
  %v637 = vunpack.c.l.b16 %v184
  %v638 = vunpack.c.h.b16 %v184
  %v639 = vunpack.c.l.b16 %v185
  %v640 = vunpack.c.h.b16 %v185
  %v641 = vunpack.c.l.b16 %v186
  %v642 = vunpack.c.h.b16 %v186
  %v643 = vunpack.c.l.b16 %v187
  %v644 = vunpack.c.h.b16 %v187
  %v645 = vunpack.c.l.b16 %v188
  %v646 = vunpack.c.h.b16 %v188
  %v647 = vunpack.c.l.b16 %v189
  %v648 = vunpack.c.h.b16 %v189
  %v649 = vunpack.c.l.b16 %v190
  %v650 = vunpack.c.h.b16 %v190
  %v651 = vunpack.c.l.b16 %v191
  %v652 = vunpack.c.h.b16 %v191
  %v653 = vunpack.c.l.b16 %v192
  %v654 = vunpack.c.h.b16 %v192
  %v655 = vunpack.c.l.b16 %v193
  %v656 = vunpack.c.h.b16 %v193
  %v657 = vunpack.c.l.b16 %v194
  %v658 = vunpack.c.h.b16 %v194
  %v659 = vunpack.c.l.b16 %v195
  %v660 = vunpack.c.h.b16 %v195
  %v661 = vunpack.c.l.b16 %v196
  %v662 = vunpack.c.h.b16 %v196
  %v663 = vunpack.c.l.b16 %v197
  %v664 = vunpack.c.h.b16 %v197
  %v665 = vunpack.c.l.b16 %v198
  %v666 = vunpack.c.h.b16 %v198
  %v667 = vunpack.c.l.b16 %v199
  %v668 = vunpack.c.h.b16 %v199
  %v669 = vunpack.c.l.b16 %v200
  %v670 = vunpack.c.h.b16 %v200
  %v671 = vunpack.c.l.b16 %v201
  %v672 = vunpack.c.h.b16 %v201
  %v673 = vunpack.c.l.b16 %v202
  %v674 = vunpack.c.h.b16 %v202
  %v675 = vunpack.c.l.b16 %v203
  %v676 = vunpack.c.h.b16 %v203
  %v677 = vunpack.c.l.b16 %v204
  %v678 = vunpack.c.h.b16 %v204
  %v679 = vunpack.c.l.b16 %v205
  %v680 = vunpack.c.h.b16 %v205
  %v681 = vunpack.c.l.b16 %v206
  %v682 = vunpack.c.h.b16 %v206
  %v683 = vunpack.c.l.b16 %v207
  %v684 = vunpack.c.h.b16 %v207
  %v685 = vunpack.c.l.b16 %v208
  %v686 = vunpack.c.h.b16 %v208
  %v687 = vunpack.c.l.b16 %v209
  %v688 = vunpack.c.h.b16 %v209
  %v689 = vunpack.c.l.b16 %v210
  %v690 = vunpack.c.h.b16 %v210
  %v691 = vunpack.c.l.b16 %v211
  %v692 = vunpack.c.h.b16 %v211
  %v693 = vunpack.c.l.b16 %v212
  %v694 = vunpack.c.h.b16 %v212
  %v695 = vunpack.c.l.b16 %v213
  %v696 = vunpack.c.h.b16 %v213
  %v697 = vunpack.c.l.b16 %v214
  %v698 = vunpack.c.h.b16 %v214
  %v699 = vunpack.c.l.b16 %v215
  %v700 = vunpack.c.h.b16 %v215
  %v701 = vunpack.c.l.b16 %v216
  %v702 = vunpack.c.h.b16 %v216
  %v703 = vunpack.c.l.b16 %v217
  %v704 = vunpack.c.h.b16 %v217
  %v705 = vunpack.c.l.b16 %v218
  %v706 = vunpack.c.h.b16 %v218
  %v707 = vunpack.c.l.b16 %v219
  %v708 = vunpack.c.h.b16 %v219
  %v709 = vunpack.c.l.b16 %v220
  %v710 = vunpack.c.h.b16 %v220
  %v711 = vunpack.c.l.b16 %v221
  %v712 = vunpack.c.h.b16 %v221
  %v713 = vunpack.c.l.b16 %v222
  %v714 = vunpack.c.h.b16 %v222
  %v715 = vunpack.c.l.b16 %v223
  %v716 = vunpack.c.h.b16 %v223
  %v717 = vunpack.c.l.b16 %v224
  %v718 = vunpack.c.h.b16 %v224
  %v719 = vunpack.c.l.b16 %v225
  %v720 = vunpack.c.h.b16 %v225
  %v721 = vunpack.c.l.b16 %v226
  %v722 = vunpack.c.h.b16 %v226
  %v723 = vunpack.c.l.b16 %v227
  %v724 = vunpack.c.h.b16 %v227
  %v725 = vunpack.c.l.b16 %v228
  %v726 = vunpack.c.h.b16 %v228
  %v727 = vunpack.c.l.b16 %v229
  %v728 = vunpack.c.h.b16 %v229
  %v729 = vunpack.c.l.b16 %v230
  %v730 = vunpack.c.h.b16 %v230
  %v731 = vunpack.c.l.b16 %v231
  %v732 = vunpack.c.h.b16 %v231
  %v733 = vunpack.c.l.b16 %v232
  %v734 = vunpack.c.h.b16 %v232
  %v735 = vunpack.c.l.b16 %v233
  %v736 = vunpack.c.h.b16 %v233
  %v737 = vunpack.c.l.b16 %v234
  %v738 = vunpack.c.h.b16 %v234
  %v739 = vunpack.c.l.b16 %v235
  %v740 = vunpack.c.h.b16 %v235
  %v741 = vunpack.c.l.b16 %v236
  %v742 = vunpack.c.h.b16 %v236
  %v743 = vunpack.c.l.b16 %v237
  %v744 = vunpack.c.h.b16 %v237
  %v745 = vunpack.c.l.b16 %v238
  %v746 = vunpack.c.h.b16 %v238
  %v747 = vunpack.c.l.b16 %v239
  %v748 = vunpack.c.h.b16 %v239
  %v749 = vunpack.c.l.b16 %v240
  %v750 = vunpack.c.h.b16 %v240
  %v751 = vunpack.c.l.b16 %v241
  %v752 = vunpack.c.h.b16 %v241
  %v753 = vunpack.c.l.b16 %v242
  %v754 = vunpack.c.h.b16 %v242
  %v755 = vunpack.c.l.b16 %v243
  %v756 = vunpack.c.h.b16 %v243
  %v757 = vunpack.c.l.b16 %v244
  %v758 = vunpack.c.h.b16 %v244
  %v759 = vunpack.c.l.b16 %v245
  %v760 = vunpack.c.h.b16 %v245
  %v761 = vunpack.c.l.b16 %v246
  %v762 = vunpack.c.h.b16 %v246
  %v763 = vunpack.c.l.b16 %v247
  %v764 = vunpack.c.h.b16 %v247
  %v765 = vunpack.c.l.b16 %v248
  %v766 = vunpack.c.h.b16 %v248
  %v767 = vunpack.c.l.b16 %v249
  %v768 = vunpack.c.h.b16 %v249
  %v769 = vunpack.c.l.b16 %v250
  %v770 = vunpack.c.h.b16 %v250
  %v771 = vunpack.c.l.b16 %v251
  %v772 = vunpack.c.h.b16 %v251
  %v773 = vunpack.c.l.b16 %v252
  %v774 = vunpack.c.h.b16 %v252
  %v775 = vunpack.c.l.b16 %v253
  %v776 = vunpack.c.h.b16 %v253
  %v777 = vunpack.c.l.b16 %v254
  %v778 = vunpack.c.h.b16 %v254
  %v779 = vunpack.c.l.b16 %v255
  %v780 = vunpack.c.h.b16 %v255
  %v781 = vunpack.c.l.b16 %v256
  %v782 = vunpack.c.h.b16 %v256
  %v783 = vunpack.c.l.b16 %v257
  %v784 = vunpack.c.h.b16 %v257
  %v785 = vunpack.c.l.b16 %v258
  %v786 = vunpack.c.h.b16 %v258
  %v787 = vunpack.c.l.b16 %v259
  %v788 = vunpack.c.h.b16 %v259
  %v789 = vunpack.c.l.b16 %v260
  %v790 = vunpack.c.h.b16 %v260
  %v791 = vunpack.c.l.b16 %v261
  %v792 = vunpack.c.h.b16 %v261
  %v793 = vunpack.c.l.b16 %v262
  %v794 = vunpack.c.h.b16 %v262
  %v795 = vunpack.c.l.b16 %v263
  %v796 = vunpack.c.h.b16 %v263
  %v797 = vunpack.c.l.b16 %v264
  %v798 = vunpack.c.h.b16 %v264
  %v799 = vunpack.c.l.b16 %v265
  %v800 = vunpack.c.h.b16 %v265
  %v801 = vunpack.c.l.b16 %v266
  %v802 = vunpack.c.h.b16 %v266
  %v803 = vunpack.c.l.b16 %v267
  %v804 = vunpack.c.h.b16 %v267
  %v805 = vunpack.c.l.b16 %v268
  %v806 = vunpack.c.h.b16 %v268
  %v807 = vunpack.c.l.b16 %v269
  %v808 = vunpack.c.h.b16 %v269
  %v809 = vunpack.c.l.b16 %v270
  %v810 = vunpack.c.h.b16 %v270
  %v811 = vunpack.c.l.b16 %v271
  %v812 = vunpack.c.h.b16 %v271
  %v813 = vunpack.c.l.b16 %v272
  %v814 = vunpack.c.h.b16 %v272
  %v815 = vunpack.c.l.b16 %v273
  %v816 = vunpack.c.h.b16 %v273
  %v817 = vunpack.c.l.b16 %v274
  %v818 = vunpack.c.h.b16 %v274
  %v819 = vunpack.c.l.b16 %v275
  %v820 = vunpack.c.h.b16 %v275
  %v821 = vunpack.c.l.b16 %v276
  %v822 = vunpack.c.h.b16 %v276
  %v823 = vunpack.c.l.b16 %v277
  %v824 = vunpack.c.h.b16 %v277
  %v825 = vunpack.c.l.b16 %v278
  %v826 = vunpack.c.h.b16 %v278
  %v827 = vunpack.c.l.b16 %v279
  %v828 = vunpack.c.h.b16 %v279
  %v829 = vunpack.c.l.b16 %v280
  %v830 = vunpack.c.h.b16 %v280
  %v831 = vunpack.c.l.b16 %v281
  %v832 = vunpack.c.h.b16 %v281
  %v833 = vunpack.c.l.b16 %v282
  %v834 = vunpack.c.h.b16 %v282
  %v835 = vunpack.c.l.b16 %v283
  %v836 = vunpack.c.h.b16 %v283
  %v837 = vunpack.c.l.b16 %v284
  %v838 = vunpack.c.h.b16 %v284
  %v839 = vunpack.c.l.b16 %v285
  %v840 = vunpack.c.h.b16 %v285
  %v841 = vunpack.c.l.b16 %v286
  %v842 = vunpack.c.h.b16 %v286
  %v843 = vunpack.c.l.b16 %v287
  %v844 = vunpack.c.h.b16 %v287
  %v845 = vunpack.c.l.b16 %v288
  %v846 = vunpack.c.h.b16 %v288
  %v847 = vunpack.c.l.b16 %v289
  %v848 = vunpack.c.h.b16 %v289
  %v849 = vunpack.c.l.b16 %v290
  %v850 = vunpack.c.h.b16 %v290
  %v851 = vunpack.c.l.b16 %v291
  %v852 = vunpack.c.h.b16 %v291
  %v853 = vunpack.c.l.b16 %v292
  %v854 = vunpack.c.h.b16 %v292
  %v855 = vunpack.c.l.b16 %v293
  %v856 = vunpack.c.h.b16 %v293
  %v857 = vunpack.c.l.b16 %v294
  %v858 = vunpack.c.h.b16 %v294
  %v859 = vunpack.c.l.b16 %v295
  %v860 = vunpack.c.h.b16 %v295
  %v861 = vunpack.c.l.b16 %v296
  %v862 = vunpack.c.h.b16 %v296
  %v863 = vunpack.c.l.b16 %v297
  %v864 = vunpack.c.h.b16 %v297
  %v865 = vunpack.c.l.b16 %v298
  %v866 = vunpack.c.h.b16 %v298
  %v867 = vunpack.c.l.b16 %v299
  %v868 = vunpack.c.h.b16 %v299
  %v869 = vunpack.c.l.b16 %v300
  %v870 = vunpack.c.h.b16 %v300
  %v871 = vunpack.c.l.b16 %v301
  %v872 = vunpack.c.h.b16 %v301
  %v873 = vunpack.c.l.b16 %v302
  %v874 = vunpack.c.h.b16 %v302
  %v875 = vunpack.c.l.b16 %v303
  %v876 = vunpack.c.h.b16 %v303
  %v877 = vunpack.c.l.b16 %v304
  %v878 = vunpack.c.h.b16 %v304
  %v879 = vunpack.c.l.b16 %v305
  %v880 = vunpack.c.h.b16 %v305
  %v881 = vunpack.c.l.b16 %v306
  %v882 = vunpack.c.h.b16 %v306
  %v883 = vpack.c.b16 %v501, %v499
  %v884 = vpack.c.b16 %v502, %v500
  %v885 = vpack.c.b16 %v505, %v503
  %v886 = vpack.c.b16 %v506, %v504
  %v887 = vpack.c.b16 %v509, %v507
  %v888 = vpack.c.b16 %v510, %v508
  %v889 = vpack.c.b16 %v513, %v511
  %v890 = vpack.c.b16 %v514, %v512
  %v891 = vpack.c.b16 %v517, %v515
  %v892 = vpack.c.b16 %v518, %v516
  %v893 = vpack.c.b16 %v521, %v519
  %v894 = vpack.c.b16 %v522, %v520
  %v895 = vpack.c.b16 %v525, %v523
  %v896 = vpack.c.b16 %v526, %v524
  %v897 = vpack.c.b16 %v529, %v527
  %v898 = vpack.c.b16 %v530, %v528
  %v899 = vpack.c.b16 %v533, %v531
  %v900 = vpack.c.b16 %v534, %v532
  %v901 = vpack.c.b16 %v537, %v535
  %v902 = vpack.c.b16 %v538, %v536
  %v903 = vpack.c.b16 %v541, %v539
  %v904 = vpack.c.b16 %v542, %v540
  %v905 = vpack.c.b16 %v545, %v543
  %v906 = vpack.c.b16 %v546, %v544
  %v907 = vpack.c.b16 %v549, %v547
  %v908 = vpack.c.b16 %v550, %v548
  %v909 = vpack.c.b16 %v553, %v551
  %v910 = vpack.c.b16 %v554, %v552
  %v911 = vpack.c.b16 %v557, %v555
  %v912 = vpack.c.b16 %v558, %v556
  %v913 = vpack.c.b16 %v561, %v559
  %v914 = vpack.c.b16 %v562, %v560
  %v915 = vpack.c.b16 %v565, %v563
  %v916 = vpack.c.b16 %v566, %v564
  %v917 = vpack.c.b16 %v569, %v567
  %v918 = vpack.c.b16 %v570, %v568
  %v919 = vpack.c.b16 %v573, %v571
  %v920 = vpack.c.b16 %v574, %v572
  %v921 = vpack.c.b16 %v577, %v575
  %v922 = vpack.c.b16 %v578, %v576
  %v923 = vpack.c.b16 %v581, %v579
  %v924 = vpack.c.b16 %v582, %v580
  %v925 = vpack.c.b16 %v585, %v583
  %v926 = vpack.c.b16 %v586, %v584
  %v927 = vpack.c.b16 %v589, %v587
  %v928 = vpack.c.b16 %v590, %v588
  %v929 = vpack.c.b16 %v593, %v591
  %v930 = vpack.c.b16 %v594, %v592
  %v931 = vpack.c.b16 %v597, %v595
  %v932 = vpack.c.b16 %v598, %v596
  %v933 = vpack.c.b16 %v601, %v599
  %v934 = vpack.c.b16 %v602, %v600
  %v935 = vpack.c.b16 %v605, %v603
  %v936 = vpack.c.b16 %v606, %v604
  %v937 = vpack.c.b16 %v609, %v607
  %v938 = vpack.c.b16 %v610, %v608
  %v939 = vpack.c.b16 %v613, %v611
  %v940 = vpack.c.b16 %v614, %v612
  %v941 = vpack.c.b16 %v617, %v615
  %v942 = vpack.c.b16 %v618, %v616
  %v943 = vpack.c.b16 %v621, %v619
  %v944 = vpack.c.b16 %v622, %v620
  %v945 = vpack.c.b16 %v625, %v623
  %v946 = vpack.c.b16 %v626, %v624
  %v947 = vpack.c.b16 %v629, %v627
  %v948 = vpack.c.b16 %v630, %v628
  %v949 = vpack.c.b16 %v633, %v631
  %v950 = vpack.c.b16 %v634, %v632
  %v951 = vpack.c.b16 %v637, %v635
  %v952 = vpack.c.b16 %v638, %v636
  %v953 = vpack.c.b16 %v641, %v639
  %v954 = vpack.c.b16 %v642, %v640
  %v955 = vpack.c.b16 %v645, %v643
  %v956 = vpack.c.b16 %v646, %v644
  %v957 = vpack.c.b16 %v649, %v647
  %v958 = vpack.c.b16 %v650, %v648
  %v959 = vpack.c.b16 %v653, %v651
  %v960 = vpack.c.b16 %v654, %v652
  %v961 = vpack.c.b16 %v657, %v655
  %v962 = vpack.c.b16 %v658, %v656
  %v963 = vpack.c.b16 %v661, %v659
  %v964 = vpack.c.b16 %v662, %v660
  %v965 = vpack.c.b16 %v665, %v663
  %v966 = vpack.c.b16 %v666, %v664
  %v967 = vpack.c.b16 %v669, %v667
  %v968 = vpack.c.b16 %v670, %v668
  %v969 = vpack.c.b16 %v673, %v671
  %v970 = vpack.c.b16 %v674, %v672
  %v971 = vpack.c.b16 %v677, %v675
  %v972 = vpack.c.b16 %v678, %v676
  %v973 = vpack.c.b16 %v681, %v679
  %v974 = vpack.c.b16 %v682, %v680
  %v975 = vpack.c.b16 %v685, %v683
  %v976 = vpack.c.b16 %v686, %v684
  %v977 = vpack.c.b16 %v689, %v687
  %v978 = vpack.c.b16 %v690, %v688
  %v979 = vpack.c.b16 %v693, %v691
  %v980 = vpack.c.b16 %v694, %v692
  %v981 = vpack.c.b16 %v697, %v695
  %v982 = vpack.c.b16 %v698, %v696
  %v983 = vpack.c.b16 %v701, %v699
  %v984 = vpack.c.b16 %v702, %v700
  %v985 = vpack.c.b16 %v705, %v703
  %v986 = vpack.c.b16 %v706, %v704
  %v987 = vpack.c.b16 %v709, %v707
  %v988 = vpack.c.b16 %v710, %v708
  %v989 = vpack.c.b16 %v713, %v711
  %v990 = vpack.c.b16 %v714, %v712
  %v991 = vpack.c.b16 %v717, %v715
  %v992 = vpack.c.b16 %v718, %v716
  %v993 = vpack.c.b16 %v721, %v719
  %v994 = vpack.c.b16 %v722, %v720
  %v995 = vpack.c.b16 %v725, %v723
  %v996 = vpack.c.b16 %v726, %v724
  %v997 = vpack.c.b16 %v729, %v727
  %v998 = vpack.c.b16 %v730, %v728
  %v999 = vpack.c.b16 %v733, %v731
  %v1000 = vpack.c.b16 %v734, %v732
  %v1001 = vpack.c.b16 %v737, %v735
  %v1002 = vpack.c.b16 %v738, %v736
  %v1003 = vpack.c.b16 %v741, %v739
  %v1004 = vpack.c.b16 %v742, %v740
  %v1005 = vpack.c.b16 %v745, %v743
  %v1006 = vpack.c.b16 %v746, %v744
  %v1007 = vpack.c.b16 %v749, %v747
  %v1008 = vpack.c.b16 %v750, %v748
  %v1009 = vpack.c.b16 %v753, %v751
  %v1010 = vpack.c.b16 %v754, %v752
  %v1011 = vpack.c.b16 %v757, %v755
  %v1012 = vpack.c.b16 %v758, %v756
  %v1013 = vpack.c.b16 %v761, %v759
  %v1014 = vpack.c.b16 %v762, %v760
  %v1015 = vpack.c.b16 %v765, %v763
  %v1016 = vpack.c.b16 %v766, %v764
  %v1017 = vpack.c.b16 %v769, %v767
  %v1018 = vpack.c.b16 %v770, %v768
  %v1019 = vpack.c.b16 %v773, %v771
  %v1020 = vpack.c.b16 %v774, %v772
  %v1021 = vpack.c.b16 %v777, %v775
  %v1022 = vpack.c.b16 %v778, %v776
  %v1023 = vpack.c.b16 %v781, %v779
  %v1024 = vpack.c.b16 %v782, %v780
  %v1025 = vpack.c.b16 %v785, %v783
  %v1026 = vpack.c.b16 %v786, %v784
  %v1027 = vpack.c.b16 %v789, %v787
  %v1028 = vpack.c.b16 %v790, %v788
  %v1029 = vpack.c.b16 %v793, %v791
  %v1030 = vpack.c.b16 %v794, %v792
  %v1031 = vpack.c.b16 %v797, %v795
  %v1032 = vpack.c.b16 %v798, %v796
  %v1033 = vpack.c.b16 %v801, %v799
  %v1034 = vpack.c.b16 %v802, %v800
  %v1035 = vpack.c.b16 %v805, %v803
  %v1036 = vpack.c.b16 %v806, %v804
  %v1037 = vpack.c.b16 %v809, %v807
  %v1038 = vpack.c.b16 %v810, %v808
  %v1039 = vpack.c.b16 %v813, %v811
  %v1040 = vpack.c.b16 %v814, %v812
  %v1041 = vpack.c.b16 %v817, %v815
  %v1042 = vpack.c.b16 %v818, %v816
  %v1043 = vpack.c.b16 %v821, %v819
  %v1044 = vpack.c.b16 %v822, %v820
  %v1045 = vpack.c.b16 %v825, %v823
  %v1046 = vpack.c.b16 %v826, %v824
  %v1047 = vpack.c.b16 %v829, %v827
  %v1048 = vpack.c.b16 %v830, %v828
  %v1049 = vpack.c.b16 %v833, %v831
  %v1050 = vpack.c.b16 %v834, %v832
  %v1051 = vpack.c.b16 %v837, %v835
  %v1052 = vpack.c.b16 %v838, %v836
  %v1053 = vpack.c.b16 %v841, %v839
  %v1054 = vpack.c.b16 %v842, %v840
  %v1055 = vpack.c.b16 %v845, %v843
  %v1056 = vpack.c.b16 %v846, %v844
  %v1057 = vpack.c.b16 %v849, %v847
  %v1058 = vpack.c.b16 %v850, %v848
  %v1059 = vpack.c.b16 %v853, %v851
  %v1060 = vpack.c.b16 %v854, %v852
  %v1061 = vpack.c.b16 %v857, %v855
  %v1062 = vpack.c.b16 %v858, %v856
  %v1063 = vpack.c.b16 %v861, %v859
  %v1064 = vpack.c.b16 %v862, %v860
  %v1065 = vpack.c.b16 %v865, %v863
  %v1066 = vpack.c.b16 %v866, %v864
  %v1067 = vpack.c.b16 %v869, %v867
  %v1068 = vpack.c.b16 %v870, %v868
  %v1069 = vpack.c.b16 %v873, %v871
  %v1070 = vpack.c.b16 %v874, %v872
  %v1071 = vpack.c.b16 %v877, %v875
  %v1072 = vpack.c.b16 %v878, %v876
  %v1073 = vpack.c.b16 %v881, %v879
  %v1074 = vpack.c.b16 %v882, %v880
  %1267 = vmatprep.subr.bf16.mxu0 %v884
  %1268 = vmatpush1.bf16.msra.mxu0 %v883
  %1269 = vmatprep.subr.bf16.mxu0 %v886
  %1270 = vmatpush1.bf16.msra.mxu0 %v885
  %1271 = vmatprep.subr.bf16.mxu0 %v888
  %1272 = vmatpush1.bf16.msra.mxu0 %v887
  %1273 = vmatprep.subr.bf16.mxu0 %v890
  %1274 = vmatpush1.bf16.msra.mxu0 %v889
  %1275 = vmatprep.subr.bf16.mxu0 %v892
  %1276 = vmatpush1.bf16.msra.mxu0 %v891
  %1277 = vmatprep.subr.bf16.mxu0 %v894
  %1278 = vmatpush1.bf16.msra.mxu0 %v893
  %1279 = vmatprep.subr.bf16.mxu0 %v896
  %1280 = vmatpush1.bf16.msra.mxu0 %v895
  %1281 = vmatprep.subr.bf16.mxu0 %v898
  %1282 = vmatpush1.bf16.msra.mxu0 %v897
  %1283 = vmatprep.subr.bf16.mxu0 %v900
  %1284 = vmatpush1.bf16.msra.mxu0 %v899
  %1285 = vmatprep.subr.bf16.mxu0 %v902
  %1286 = vmatpush1.bf16.msra.mxu0 %v901
  %1287 = vmatprep.subr.bf16.mxu0 %v904
  %1288 = vmatpush1.bf16.msra.mxu0 %v903
  %1289 = vmatprep.subr.bf16.mxu0 %v906
  %1290 = vmatpush1.bf16.msra.mxu0 %v905
  %1291 = vmatprep.subr.bf16.mxu0 %v908
  %1292 = vmatpush1.bf16.msra.mxu0 %v907
  %1293 = vmatprep.subr.bf16.mxu0 %v910
  %1294 = vmatpush1.bf16.msra.mxu0 %v909
  %1295 = vmatprep.subr.bf16.mxu0 %v912
  %1296 = vmatpush1.bf16.msra.mxu0 %v911
  %1297 = vmatprep.subr.bf16.mxu0 %v914
  %1298 = vmatpush1.bf16.msra.mxu0 %v913
  %1299 = vmatprep.mubr.bf16.mxu0 %v104
  %1300 = vmatmul.mubr.bf16.gmra.mrb[0].mxu0 %v103
  %v1301 = vpop.f32.mrb[0].mxu0
  %v1302 = vadd.f32 0.0, %v1301
  %v1303 = vpop.f32.mrb[0].mxu0
  %v1304 = vadd.f32 0.0, %v1303
  %v1305 = vpop.f32.mrb[0].mxu0
  %v1306 = vpop.f32.mrb[0].mxu0
  %1307 = vdwg.mxu0
  %1308 = vmatprep.subr.bf16.mxu0 %v916
  %1309 = vmatpush1.bf16.msra.mxu0 %v915
  %1310 = vmatprep.subr.bf16.mxu0 %v918
  %1311 = vmatpush1.bf16.msra.mxu0 %v917
  %1312 = vmatprep.subr.bf16.mxu0 %v920
  %1313 = vmatpush1.bf16.msra.mxu0 %v919
  %1314 = vmatprep.subr.bf16.mxu0 %v922
  %1315 = vmatpush1.bf16.msra.mxu0 %v921
  %1316 = vmatprep.subr.bf16.mxu0 %v924
  %1317 = vmatpush1.bf16.msra.mxu0 %v923
  %1318 = vmatprep.subr.bf16.mxu0 %v926
  %1319 = vmatpush1.bf16.msra.mxu0 %v925
  %1320 = vmatprep.subr.bf16.mxu0 %v928
  %1321 = vmatpush1.bf16.msra.mxu0 %v927
  %1322 = vmatprep.subr.bf16.mxu0 %v930
  %1323 = vmatpush1.bf16.msra.mxu0 %v929
  %1324 = vmatprep.subr.bf16.mxu0 %v932
  %1325 = vmatpush1.bf16.msra.mxu0 %v931
  %1326 = vmatprep.subr.bf16.mxu0 %v934
  %1327 = vmatpush1.bf16.msra.mxu0 %v933
  %1328 = vmatprep.subr.bf16.mxu0 %v936
  %1329 = vmatpush1.bf16.msra.mxu0 %v935
  %1330 = vmatprep.subr.bf16.mxu0 %v938
  %1331 = vmatpush1.bf16.msra.mxu0 %v937
  %1332 = vmatprep.subr.bf16.mxu0 %v940
  %1333 = vmatpush1.bf16.msra.mxu0 %v939
  %1334 = vmatprep.subr.bf16.mxu0 %v942
  %1335 = vmatpush1.bf16.msra.mxu0 %v941
  %1336 = vmatprep.subr.bf16.mxu0 %v944
  %1337 = vmatpush1.bf16.msra.mxu0 %v943
  %1338 = vmatprep.subr.bf16.mxu0 %v946
  %1339 = vmatpush1.bf16.msra.mxu0 %v945
  %1340 = vmatprep.mubr.bf16.mxu0 %v106
  %1341 = vmatmul.mubr.bf16.gmra.mrb[0].mxu0 %v105
  %v1342 = vpop.f32.mrb[0].mxu0
  %v1343 = vadd.f32 %v1302, %v1342
  %v1344 = vpop.f32.mrb[0].mxu0
  %v1345 = vadd.f32 %v1304, %v1344
  %v1346 = vpop.f32.mrb[0].mxu0
  %v1347 = vpop.f32.mrb[0].mxu0
  %1348 = vdwg.mxu0
  %1349 = vmatprep.subr.bf16.mxu0 %v948
  %1350 = vmatpush1.bf16.msra.mxu0 %v947
  %1351 = vmatprep.subr.bf16.mxu0 %v950
  %1352 = vmatpush1.bf16.msra.mxu0 %v949
  %1353 = vmatprep.subr.bf16.mxu0 %v952
  %1354 = vmatpush1.bf16.msra.mxu0 %v951
  %1355 = vmatprep.subr.bf16.mxu0 %v954
  %1356 = vmatpush1.bf16.msra.mxu0 %v953
  %1357 = vmatprep.subr.bf16.mxu0 %v956
  %1358 = vmatpush1.bf16.msra.mxu0 %v955
  %1359 = vmatprep.subr.bf16.mxu0 %v958
  %1360 = vmatpush1.bf16.msra.mxu0 %v957
  %1361 = vmatprep.subr.bf16.mxu0 %v960
  %1362 = vmatpush1.bf16.msra.mxu0 %v959
  %1363 = vmatprep.subr.bf16.mxu0 %v962
  %1364 = vmatpush1.bf16.msra.mxu0 %v961
  %1365 = vmatprep.subr.bf16.mxu0 %v964
  %1366 = vmatpush1.bf16.msra.mxu0 %v963
  %1367 = vmatprep.subr.bf16.mxu0 %v966
  %1368 = vmatpush1.bf16.msra.mxu0 %v965
  %1369 = vmatprep.subr.bf16.mxu0 %v968
  %1370 = vmatpush1.bf16.msra.mxu0 %v967
  %1371 = vmatprep.subr.bf16.mxu0 %v970
  %1372 = vmatpush1.bf16.msra.mxu0 %v969
  %1373 = vmatprep.subr.bf16.mxu0 %v972
  %1374 = vmatpush1.bf16.msra.mxu0 %v971
  %1375 = vmatprep.subr.bf16.mxu0 %v974
  %1376 = vmatpush1.bf16.msra.mxu0 %v973
  %1377 = vmatprep.subr.bf16.mxu0 %v976
  %1378 = vmatpush1.bf16.msra.mxu0 %v975
  %1379 = vmatprep.subr.bf16.mxu0 %v978
  %1380 = vmatpush1.bf16.msra.mxu0 %v977
  %1381 = vmatprep.mubr.bf16.mxu0 %v108
  %1382 = vmatmul.mubr.bf16.gmra.mrb[0].mxu0 %v107
  %v1383 = vpop.f32.mrb[0].mxu0
  %v1384 = vadd.f32 %v1343, %v1383
  %v1385 = vpop.f32.mrb[0].mxu0
  %v1386 = vadd.f32 %v1345, %v1385
  %v1387 = vpop.f32.mrb[0].mxu0
  %v1388 = vpop.f32.mrb[0].mxu0
  %1389 = vdwg.mxu0
  %1390 = vmatprep.subr.bf16.mxu0 %v980
  %1391 = vmatpush1.bf16.msra.mxu0 %v979
  %1392 = vmatprep.subr.bf16.mxu0 %v982
  %1393 = vmatpush1.bf16.msra.mxu0 %v981
  %1394 = vmatprep.subr.bf16.mxu0 %v984
  %1395 = vmatpush1.bf16.msra.mxu0 %v983
  %1396 = vmatprep.subr.bf16.mxu0 %v986
  %1397 = vmatpush1.bf16.msra.mxu0 %v985
  %1398 = vmatprep.subr.bf16.mxu0 %v988
  %1399 = vmatpush1.bf16.msra.mxu0 %v987
  %1400 = vmatprep.subr.bf16.mxu0 %v990
  %1401 = vmatpush1.bf16.msra.mxu0 %v989
  %1402 = vmatprep.subr.bf16.mxu0 %v992
  %1403 = vmatpush1.bf16.msra.mxu0 %v991
  %1404 = vmatprep.subr.bf16.mxu0 %v994
  %1405 = vmatpush1.bf16.msra.mxu0 %v993
  %1406 = vmatprep.subr.bf16.mxu0 %v996
  %1407 = vmatpush1.bf16.msra.mxu0 %v995
  %1408 = vmatprep.subr.bf16.mxu0 %v998
  %1409 = vmatpush1.bf16.msra.mxu0 %v997
  %1410 = vmatprep.subr.bf16.mxu0 %v1000
  %1411 = vmatpush1.bf16.msra.mxu0 %v999
  %1412 = vmatprep.subr.bf16.mxu0 %v1002
  %1413 = vmatpush1.bf16.msra.mxu0 %v1001
  %1414 = vmatprep.subr.bf16.mxu0 %v1004
  %1415 = vmatpush1.bf16.msra.mxu0 %v1003
  %1416 = vmatprep.subr.bf16.mxu0 %v1006
  %1417 = vmatpush1.bf16.msra.mxu0 %v1005
  %1418 = vmatprep.subr.bf16.mxu0 %v1008
  %1419 = vmatpush1.bf16.msra.mxu0 %v1007
  %1420 = vmatprep.subr.bf16.mxu0 %v1010
  %1421 = vmatpush1.bf16.msra.mxu0 %v1009
  %1422 = vmatprep.mubr.bf16.mxu0 %v110
  %1423 = vmatmul.mubr.bf16.gmra.mrb[0].mxu0 %v109
  %v1424 = vpop.f32.mrb[0].mxu0
  %v1425 = vadd.f32 %v1384, %v1424
  %v1426 = vpop.f32.mrb[0].mxu0
  %v1427 = vadd.f32 %v1386, %v1426
  %v1428 = vpop.f32.mrb[0].mxu0
  %v1429 = vpop.f32.mrb[0].mxu0
  %1430 = vdwg.mxu0
  %1431 = vmatprep.subr.bf16.mxu0 %v1012
  %1432 = vmatpush1.bf16.msra.mxu0 %v1011
  %1433 = vmatprep.subr.bf16.mxu0 %v1014
  %1434 = vmatpush1.bf16.msra.mxu0 %v1013
  %1435 = vmatprep.subr.bf16.mxu0 %v1016
  %1436 = vmatpush1.bf16.msra.mxu0 %v1015
  %1437 = vmatprep.subr.bf16.mxu0 %v1018
  %1438 = vmatpush1.bf16.msra.mxu0 %v1017
  %1439 = vmatprep.subr.bf16.mxu0 %v1020
  %1440 = vmatpush1.bf16.msra.mxu0 %v1019
  %1441 = vmatprep.subr.bf16.mxu0 %v1022
  %1442 = vmatpush1.bf16.msra.mxu0 %v1021
  %1443 = vmatprep.subr.bf16.mxu0 %v1024
  %1444 = vmatpush1.bf16.msra.mxu0 %v1023
  %1445 = vmatprep.subr.bf16.mxu0 %v1026
  %1446 = vmatpush1.bf16.msra.mxu0 %v1025
  %1447 = vmatprep.subr.bf16.mxu0 %v1028
  %1448 = vmatpush1.bf16.msra.mxu0 %v1027
  %1449 = vmatprep.subr.bf16.mxu0 %v1030
  %1450 = vmatpush1.bf16.msra.mxu0 %v1029
  %1451 = vmatprep.subr.bf16.mxu0 %v1032
  %1452 = vmatpush1.bf16.msra.mxu0 %v1031
  %1453 = vmatprep.subr.bf16.mxu0 %v1034
  %1454 = vmatpush1.bf16.msra.mxu0 %v1033
  %1455 = vmatprep.subr.bf16.mxu0 %v1036
  %1456 = vmatpush1.bf16.msra.mxu0 %v1035
  %1457 = vmatprep.subr.bf16.mxu0 %v1038
  %1458 = vmatpush1.bf16.msra.mxu0 %v1037
  %1459 = vmatprep.subr.bf16.mxu0 %v1040
  %1460 = vmatpush1.bf16.msra.mxu0 %v1039
  %1461 = vmatprep.subr.bf16.mxu0 %v1042
  %1462 = vmatpush1.bf16.msra.mxu0 %v1041
  %1463 = vmatprep.mubr.bf16.mxu0 %v112
  %1464 = vmatmul.mubr.bf16.gmra.mrb[0].mxu0 %v111
  %v1465 = vpop.f32.mrb[0].mxu0
  %v1466 = vadd.f32 %v1425, %v1465
  %v1467 = vpop.f32.mrb[0].mxu0
  %v1468 = vadd.f32 %v1427, %v1467
  %v1469 = vpop.f32.mrb[0].mxu0
  %v1470 = vpop.f32.mrb[0].mxu0
  %1471 = vdwg.mxu0
  %1472 = vmatprep.subr.bf16.mxu0 %v1044
  %1473 = vmatpush1.bf16.msra.mxu0 %v1043
  %1474 = vmatprep.subr.bf16.mxu0 %v1046
  %1475 = vmatpush1.bf16.msra.mxu0 %v1045
  %1476 = vmatprep.subr.bf16.mxu0 %v1048
  %1477 = vmatpush1.bf16.msra.mxu0 %v1047
  %1478 = vmatprep.subr.bf16.mxu0 %v1050
  %1479 = vmatpush1.bf16.msra.mxu0 %v1049
  %1480 = vmatprep.subr.bf16.mxu0 %v1052
  %1481 = vmatpush1.bf16.msra.mxu0 %v1051
  %1482 = vmatprep.subr.bf16.mxu0 %v1054
  %1483 = vmatpush1.bf16.msra.mxu0 %v1053
  %1484 = vmatprep.subr.bf16.mxu0 %v1056
  %1485 = vmatpush1.bf16.msra.mxu0 %v1055
  %1486 = vmatprep.subr.bf16.mxu0 %v1058
  %1487 = vmatpush1.bf16.msra.mxu0 %v1057
  %1488 = vmatprep.subr.bf16.mxu0 %v1060
  %1489 = vmatpush1.bf16.msra.mxu0 %v1059
  %1490 = vmatprep.subr.bf16.mxu0 %v1062
  %1491 = vmatpush1.bf16.msra.mxu0 %v1061
  %1492 = vmatprep.subr.bf16.mxu0 %v1064
  %1493 = vmatpush1.bf16.msra.mxu0 %v1063
  %1494 = vmatprep.subr.bf16.mxu0 %v1066
  %1495 = vmatpush1.bf16.msra.mxu0 %v1065
  %1496 = vmatprep.subr.bf16.mxu0 %v1068
  %1497 = vmatpush1.bf16.msra.mxu0 %v1067
  %1498 = vmatprep.subr.bf16.mxu0 %v1070
  %1499 = vmatpush1.bf16.msra.mxu0 %v1069
  %1500 = vmatprep.subr.bf16.mxu0 %v1072
  %1501 = vmatpush1.bf16.msra.mxu0 %v1071
  %1502 = vmatprep.subr.bf16.mxu0 %v1074
  %1503 = vmatpush1.bf16.msra.mxu0 %v1073
  %1504 = vmatprep.mubr.bf16.mxu0 %v114
  %1505 = vmatmul.mubr.bf16.gmra.mrb[0].mxu0 %v113
  %v1506 = vpop.f32.mrb[0].mxu0
  %v1507 = vadd.f32 %v1466, %v1506
  %v1508 = vpop.f32.mrb[0].mxu0
  %v1509 = vadd.f32 %v1468, %v1508
  %v1510 = vpop.f32.mrb[0].mxu0
  %v1511 = vpop.f32.mrb[0].mxu0
  %1512 = vdwg.mxu0
  %v1513 = vld [vmem:[%s2] sm:$0xff]
  %v1514 = vld [vmem:[%s2 + $0x8] sm:$0xff]
  %v1515 = vld [vmem:[%s2 + $0x10] sm:$0xff]
  %v1516 = vld [vmem:[%s2 + $0x18] sm:$0xff]
  %v1517 = vld [vmem:[%s2 + $0x20] sm:$0xff]
  %v1518 = vld [vmem:[%s2 + $0x28] sm:$0xff]
  %v1519 = vld [vmem:[%s2 + $0x30] sm:$0xff]
  %v1520 = vld [vmem:[%s2 + $0x38] sm:$0xff]
  %v1521 = vld [vmem:[%s2 + $0x40] sm:$0xff]
  %v1522 = vld [vmem:[%s2 + $0x48] sm:$0xff]
  %v1523 = vld [vmem:[%s2 + $0x50] sm:$0xff]
  %v1524 = vld [vmem:[%s2 + $0x58] sm:$0xff]
  %v1525 = vld [vmem:[%s2 + $0x60] sm:$0xff]
  %v1526 = vld [vmem:[%s2 + $0x68] sm:$0xff]
  %v1527 = vld [vmem:[%s2 + $0x70] sm:$0xff]
  %v1528 = vld [vmem:[%s2 + $0x78] sm:$0xff]
  %v1529 = vld [vmem:[%s2 + $0x80] sm:$0xff]
  %v1530 = vld [vmem:[%s2 + $0x88] sm:$0xff]
  %v1531 = vld [vmem:[%s2 + $0x90] sm:$0xff]
  %v1532 = vld [vmem:[%s2 + $0x98] sm:$0xff]
  %v1533 = vld [vmem:[%s2 + $0xa0] sm:$0xff]
  %v1534 = vld [vmem:[%s2 + $0xa8] sm:$0xff]
  %v1535 = vld [vmem:[%s2 + $0xb0] sm:$0xff]
  %v1536 = vld [vmem:[%s2 + $0xb8] sm:$0xff]
  %v1537 = vld [vmem:[%s2 + $0xc0] sm:$0xff]
  %v1538 = vld [vmem:[%s2 + $0xc8] sm:$0xff]
  %v1539 = vld [vmem:[%s2 + $0xd0] sm:$0xff]
  %v1540 = vld [vmem:[%s2 + $0xd8] sm:$0xff]
  %v1541 = vld [vmem:[%s2 + $0xe0] sm:$0xff]
  %v1542 = vld [vmem:[%s2 + $0xe8] sm:$0xff]
  %v1543 = vld [vmem:[%s2 + $0xf0] sm:$0xff]
  %v1544 = vld [vmem:[%s2 + $0xf8] sm:$0xff]
  %1545 = vmatprep.subr.mxu0 %v1514
  %1546 = vmatpush1.msra.mxu0 %v1513
  %1547 = vmatprep.subr.mxu0 %v1516
  %1548 = vmatpush1.msra.mxu0 %v1515
  %1549 = vmatprep.subr.mxu0 %v1518
  %1550 = vmatpush1.msra.mxu0 %v1517
  %1551 = vmatprep.subr.mxu0 %v1520
  %1552 = vmatpush1.msra.mxu0 %v1519
  %1553 = vmatprep.subr.mxu0 %v1522
  %1554 = vmatpush1.msra.mxu0 %v1521
  %1555 = vmatprep.subr.mxu0 %v1524
  %1556 = vmatpush1.msra.mxu0 %v1523
  %1557 = vmatprep.subr.mxu0 %v1526
  %1558 = vmatpush1.msra.mxu0 %v1525
  %1559 = vmatprep.subr.mxu0 %v1528
  %1560 = vmatpush1.msra.mxu0 %v1527
  %1561 = vmatprep.subr.mxu0 %v1530
  %1562 = vmatpush1.msra.mxu0 %v1529
  %1563 = vmatprep.subr.mxu0 %v1532
  %1564 = vmatpush1.msra.mxu0 %v1531
  %1565 = vmatprep.subr.mxu0 %v1534
  %1566 = vmatpush1.msra.mxu0 %v1533
  %1567 = vmatprep.subr.mxu0 %v1536
  %1568 = vmatpush1.msra.mxu0 %v1535
  %1569 = vmatprep.subr.mxu0 %v1538
  %1570 = vmatpush1.msra.mxu0 %v1537
  %1571 = vmatprep.subr.mxu0 %v1540
  %1572 = vmatpush1.msra.mxu0 %v1539
  %1573 = vmatprep.subr.mxu0 %v1542
  %1574 = vmatpush1.msra.mxu0 %v1541
  %1575 = vmatprep.subr.mxu0 %v1544
  %1576 = vmatpush1.msra.mxu0 %v1543
  %1577 = vmatprep.subr.mxu0 0.0
  %1578 = vmatpush1.msra.mxu0 0.0
  %1579 = vmatprep.subr.mxu0 0.0
  %1580 = vmatpush1.msra.mxu0 0.0
  %1581 = vmatprep.subr.mxu0 0.0
  %1582 = vmatpush1.msra.mxu0 0.0
  %1583 = vmatprep.subr.mxu0 0.0
  %1584 = vmatpush1.msra.mxu0 0.0
  %1585 = vmatprep.subr.mxu0 0.0
  %1586 = vmatpush1.msra.mxu0 0.0
  %1587 = vmatprep.subr.mxu0 0.0
  %1588 = vmatpush1.msra.mxu0 0.0
  %1589 = vmatprep.subr.mxu0 0.0
  %1590 = vmatpush1.msra.mxu0 0.0
  %1591 = vmatprep.subr.mxu0 0.0
  %1592 = vmatpush1.msra.mxu0 0.0
  %1593 = vmatprep.subr.mxu0 0.0
  %1594 = vmatpush1.msra.mxu0 0.0
  %1595 = vmatprep.subr.mxu0 0.0
  %1596 = vmatpush1.msra.mxu0 0.0
  %1597 = vmatprep.subr.mxu0 0.0
  %1598 = vmatpush1.msra.mxu0 0.0
  %1599 = vmatprep.subr.mxu0 0.0
  %1600 = vmatpush1.msra.mxu0 0.0
  %1601 = vmatprep.subr.mxu0 0.0
  %1602 = vmatpush1.msra.mxu0 0.0
  %1603 = vmatprep.subr.mxu0 0.0
  %1604 = vmatpush1.msra.mxu0 0.0
  %1605 = vmatprep.subr.mxu0 0.0
  %1606 = vmatpush1.msra.mxu0 0.0
  %1607 = vmatprep.subr.mxu0 0.0
  %1608 = vmatpush1.msra.mxu0 0.0
  %1609 = vmatprep.mubr.f32.mxu0 0.0
  %1610 = vmatmul.mubr.f32.gmra.mrb[0].mxu0 %v1507
  %v1611 = vpop.f32.mrb[0].mxu0
  %v1612 = vadd.f32 0.0, %v1611
  %v1613 = vpop.f32.mrb[0].mxu0
  %v1614 = vadd.f32 0.0, %v1613
  %1615 = vdwg.mxu0
  %1616 = vmatprep.subr.mxu0 %v1514
  %1617 = vmatpush1.msra.mxu0 %v1513
  %1618 = vmatprep.subr.mxu0 %v1516
  %1619 = vmatpush1.msra.mxu0 %v1515
  %1620 = vmatprep.subr.mxu0 %v1518
  %1621 = vmatpush1.msra.mxu0 %v1517
  %1622 = vmatprep.subr.mxu0 %v1520
  %1623 = vmatpush1.msra.mxu0 %v1519
  %1624 = vmatprep.subr.mxu0 %v1522
  %1625 = vmatpush1.msra.mxu0 %v1521
  %1626 = vmatprep.subr.mxu0 %v1524
  %1627 = vmatpush1.msra.mxu0 %v1523
  %1628 = vmatprep.subr.mxu0 %v1526
  %1629 = vmatpush1.msra.mxu0 %v1525
  %1630 = vmatprep.subr.mxu0 %v1528
  %1631 = vmatpush1.msra.mxu0 %v1527
  %1632 = vmatprep.subr.mxu0 %v1530
  %1633 = vmatpush1.msra.mxu0 %v1529
  %1634 = vmatprep.subr.mxu0 %v1532
  %1635 = vmatpush1.msra.mxu0 %v1531
  %1636 = vmatprep.subr.mxu0 %v1534
  %1637 = vmatpush1.msra.mxu0 %v1533
  %1638 = vmatprep.subr.mxu0 %v1536
  %1639 = vmatpush1.msra.mxu0 %v1535
  %1640 = vmatprep.subr.mxu0 %v1538
  %1641 = vmatpush1.msra.mxu0 %v1537
  %1642 = vmatprep.subr.mxu0 %v1540
  %1643 = vmatpush1.msra.mxu0 %v1539
  %1644 = vmatprep.subr.mxu0 %v1542
  %1645 = vmatpush1.msra.mxu0 %v1541
  %1646 = vmatprep.subr.mxu0 %v1544
  %1647 = vmatpush1.msra.mxu0 %v1543
  %1648 = vmatprep.subr.mxu0 0.0
  %1649 = vmatpush1.msra.mxu0 0.0
  %1650 = vmatprep.subr.mxu0 0.0
  %1651 = vmatpush1.msra.mxu0 0.0
  %1652 = vmatprep.subr.mxu0 0.0
  %1653 = vmatpush1.msra.mxu0 0.0
  %1654 = vmatprep.subr.mxu0 0.0
  %1655 = vmatpush1.msra.mxu0 0.0
  %1656 = vmatprep.subr.mxu0 0.0
  %1657 = vmatpush1.msra.mxu0 0.0
  %1658 = vmatprep.subr.mxu0 0.0
  %1659 = vmatpush1.msra.mxu0 0.0
  %1660 = vmatprep.subr.mxu0 0.0
  %1661 = vmatpush1.msra.mxu0 0.0
  %1662 = vmatprep.subr.mxu0 0.0
  %1663 = vmatpush1.msra.mxu0 0.0
  %1664 = vmatprep.subr.mxu0 0.0
  %1665 = vmatpush1.msra.mxu0 0.0
  %1666 = vmatprep.subr.mxu0 0.0
  %1667 = vmatpush1.msra.mxu0 0.0
  %1668 = vmatprep.subr.mxu0 0.0
  %1669 = vmatpush1.msra.mxu0 0.0
  %1670 = vmatprep.subr.mxu0 0.0
  %1671 = vmatpush1.msra.mxu0 0.0
  %1672 = vmatprep.subr.mxu0 0.0
  %1673 = vmatpush1.msra.mxu0 0.0
  %1674 = vmatprep.subr.mxu0 0.0
  %1675 = vmatpush1.msra.mxu0 0.0
  %1676 = vmatprep.subr.mxu0 0.0
  %1677 = vmatpush1.msra.mxu0 0.0
  %1678 = vmatprep.subr.mxu0 0.0
  %1679 = vmatpush1.msra.mxu0 0.0
  %1680 = vmatprep.mubr.f32.mxu0 0.0
  %1681 = vmatmul.mubr.f32.gmra.mrb[0].mxu0 %v1509
  %v1682 = vpop.f32.mrb[0].mxu0
  %v1683 = vadd.f32 0.0, %v1682
  %v1684 = vpop.f32.mrb[0].mxu0
  %v1685 = vadd.f32 0.0, %v1684
  %1686 = vdwg.mxu0
  %v1687 = vmul.f32 %v1612, %v1683
  %v1688 = vmul.f32 %v1614, %v1685
  %v1689 = vsub.f32 %v1687, %v1688
  %v1690 = vmul.f32 %v1612, %v1685
  %v1691 = vmul.f32 %v1614, %v1683
  %v1692 = vadd.f32 %v1690, %v1691
  %v1693 = vld [vmem:[%s3] sm:$0xff]
  %v1694 = vld [vmem:[%s3 + $0x8] sm:$0xff]
  %v1695 = vld [vmem:[%s3 + $0x10] sm:$0xff]
  %v1696 = vld [vmem:[%s3 + $0x18] sm:$0xff]
  %v1697 = vld [vmem:[%s3 + $0x20] sm:$0xff]
  %v1698 = vld [vmem:[%s3 + $0x28] sm:$0xff]
  %v1699 = vld [vmem:[%s3 + $0x30] sm:$0xff]
  %v1700 = vld [vmem:[%s3 + $0x38] sm:$0xff]
  %v1701 = vld [vmem:[%s3 + $0x40] sm:$0xff]
  %v1702 = vld [vmem:[%s3 + $0x48] sm:$0xff]
  %v1703 = vld [vmem:[%s3 + $0x50] sm:$0xff]
  %v1704 = vld [vmem:[%s3 + $0x58] sm:$0xff]
  %v1705 = vld [vmem:[%s3 + $0x60] sm:$0xff]
  %v1706 = vld [vmem:[%s3 + $0x68] sm:$0xff]
  %v1707 = vld [vmem:[%s3 + $0x70] sm:$0xff]
  %v1708 = vld [vmem:[%s3 + $0x78] sm:$0xff]
  %v1709 = vld [vmem:[%s3 + $0x80] sm:$0xff]
  %v1710 = vld [vmem:[%s3 + $0x88] sm:$0xff]
  %v1711 = vld [vmem:[%s3 + $0x90] sm:$0xff]
  %v1712 = vld [vmem:[%s3 + $0x98] sm:$0xff]
  %v1713 = vld [vmem:[%s3 + $0xa0] sm:$0xff]
  %v1714 = vld [vmem:[%s3 + $0xa8] sm:$0xff]
  %v1715 = vld [vmem:[%s3 + $0xb0] sm:$0xff]
  %v1716 = vld [vmem:[%s3 + $0xb8] sm:$0xff]
  %v1717 = vld [vmem:[%s3 + $0xc0] sm:$0xff]
  %v1718 = vld [vmem:[%s3 + $0xc8] sm:$0xff]
  %v1719 = vld [vmem:[%s3 + $0xd0] sm:$0xff]
  %v1720 = vld [vmem:[%s3 + $0xd8] sm:$0xff]
  %v1721 = vld [vmem:[%s3 + $0xe0] sm:$0xff]
  %v1722 = vld [vmem:[%s3 + $0xe8] sm:$0xff]
  %v1723 = vld [vmem:[%s3 + $0xf0] sm:$0xff]
  %v1724 = vld [vmem:[%s3 + $0xf8] sm:$0xff]
  %1725 = vmatprep.subr.mxu0 0.0
  %1726 = vmatpush1.msra.mxu0 %v1693
  %1727 = vmatprep.subr.mxu0 0.0
  %1728 = vmatpush1.msra.mxu0 %v1694
  %1729 = vmatprep.subr.mxu0 0.0
  %1730 = vmatpush1.msra.mxu0 %v1695
  %1731 = vmatprep.subr.mxu0 0.0
  %1732 = vmatpush1.msra.mxu0 %v1696
  %1733 = vmatprep.subr.mxu0 0.0
  %1734 = vmatpush1.msra.mxu0 %v1697
  %1735 = vmatprep.subr.mxu0 0.0
  %1736 = vmatpush1.msra.mxu0 %v1698
  %1737 = vmatprep.subr.mxu0 0.0
  %1738 = vmatpush1.msra.mxu0 %v1699
  %1739 = vmatprep.subr.mxu0 0.0
  %1740 = vmatpush1.msra.mxu0 %v1700
  %1741 = vmatprep.subr.mxu0 0.0
  %1742 = vmatpush1.msra.mxu0 %v1701
  %1743 = vmatprep.subr.mxu0 0.0
  %1744 = vmatpush1.msra.mxu0 %v1702
  %1745 = vmatprep.subr.mxu0 0.0
  %1746 = vmatpush1.msra.mxu0 %v1703
  %1747 = vmatprep.subr.mxu0 0.0
  %1748 = vmatpush1.msra.mxu0 %v1704
  %1749 = vmatprep.subr.mxu0 0.0
  %1750 = vmatpush1.msra.mxu0 %v1705
  %1751 = vmatprep.subr.mxu0 0.0
  %1752 = vmatpush1.msra.mxu0 %v1706
  %1753 = vmatprep.subr.mxu0 0.0
  %1754 = vmatpush1.msra.mxu0 %v1707
  %1755 = vmatprep.subr.mxu0 0.0
  %1756 = vmatpush1.msra.mxu0 %v1708
  %1757 = vmatprep.subr.mxu0 0.0
  %1758 = vmatpush1.msra.mxu0 %v1709
  %1759 = vmatprep.subr.mxu0 0.0
  %1760 = vmatpush1.msra.mxu0 %v1710
  %1761 = vmatprep.subr.mxu0 0.0
  %1762 = vmatpush1.msra.mxu0 %v1711
  %1763 = vmatprep.subr.mxu0 0.0
  %1764 = vmatpush1.msra.mxu0 %v1712
  %1765 = vmatprep.subr.mxu0 0.0
  %1766 = vmatpush1.msra.mxu0 %v1713
  %1767 = vmatprep.subr.mxu0 0.0
  %1768 = vmatpush1.msra.mxu0 %v1714
  %1769 = vmatprep.subr.mxu0 0.0
  %1770 = vmatpush1.msra.mxu0 %v1715
  %1771 = vmatprep.subr.mxu0 0.0
  %1772 = vmatpush1.msra.mxu0 %v1716
  %1773 = vmatprep.subr.mxu0 0.0
  %1774 = vmatpush1.msra.mxu0 %v1717
  %1775 = vmatprep.subr.mxu0 0.0
  %1776 = vmatpush1.msra.mxu0 %v1718
  %1777 = vmatprep.subr.mxu0 0.0
  %1778 = vmatpush1.msra.mxu0 %v1719
  %1779 = vmatprep.subr.mxu0 0.0
  %1780 = vmatpush1.msra.mxu0 %v1720
  %1781 = vmatprep.subr.mxu0 0.0
  %1782 = vmatpush1.msra.mxu0 %v1721
  %1783 = vmatprep.subr.mxu0 0.0
  %1784 = vmatpush1.msra.mxu0 %v1722
  %1785 = vmatprep.subr.mxu0 0.0
  %1786 = vmatpush1.msra.mxu0 %v1723
  %1787 = vmatprep.subr.mxu0 0.0
  %1788 = vmatpush1.msra.mxu0 %v1724
  %1789 = vmatprep.mubr.f32.mxu0 %v1692
  %1790 = vmatmul.mubr.f32.gmra.mrb[0].mxu0 %v1689
  %v1791 = vpop.f32.mrb[0].mxu0
  %v1792 = vadd.f32 0.0, %v1791
  %v1793 = vpop.f32.mrb[0].mxu0
  %1794 = vdwg.mxu0
  %v1795 = vmul.f32 %v1792, %v1792
  %vm1796 = vcmask 1041408
  %v1797 = vsel %vm1796, %v1795, 0.0
  %1798 = vadd.xlane.f32.xlu0 %v1797
  %v1799 = vpop.xlane.xlu0 %1798
  %v1800 = vmax.f32 %v1799, 1e-24
  %v1801 = vrsqrt.pop %v1800
  %v1802 = vmul.f32 %v1792, %v1801
  %v1803 = vsel %vm1796, %v1802, 0.0
  %v1804 = vrot.slane %v1803, 4
  %v1805 = vadd.f32 %v1803, %v1804
  %v1806 = vrot.slane %v1805, 2
  %v1807 = vadd.f32 %v1805, %v1806
  %v1808 = vrot.slane %v1807, 1
  %v1809 = vadd.f32 %v1807, %v1808
  %v1810 = vrcp.pop 2.0
  %v1811 = vmul.f32 %v1809, %v1810
  %v1812 = vsub.f32 %v1802, %v1811
  %v1813 = vmul.f32 %v1812, %v1812
  %v1814 = vsel %vm1796, %v1813, 0.0
  %v1815 = vrot.slane %v1814, 4
  %v1816 = vadd.f32 %v1814, %v1815
  %v1817 = vrot.slane %v1816, 2
  %v1818 = vadd.f32 %v1816, %v1817
  %v1819 = vrot.slane %v1818, 1
  %v1820 = vadd.f32 %v1818, %v1819
  %v1821 = vmul.f32 %v1820, %v1810
  %v1822 = vadd.f32 %v1821, 1e-05
  %v1823 = vrsqrt.pop %v1822
  %v1824 = vmul.f32 %v1812, %v1823
  %v1825 = vld [vmem:[%s4] sm:$0x1]
  %v1827 = vlaneseq
  %v1828 = vshrl.u32 %v1827, 7
  %v1829 = vsub.s32 0, %v1828
  %v1830 = vrot.slane %v1825, %v1829
  %v1832 = vmul.f32 %v1824, %v1830
  %v1833 = vld [vmem:[%s5] sm:$0x1]
  %v1835 = vlaneseq
  %v1836 = vshrl.u32 %v1835, 7
  %v1837 = vsub.s32 0, %v1836
  %v1838 = vrot.slane %v1833, %v1837
  %v1840 = vadd.f32 %v1832, %v1838
  %v1841 = vld [vmem:[%s8] sm:$0x3]
  %vm1842 = vcmp.ge.s32.totalorder %v1841, 1677722
  %v1843 = vsel %vm1842, %v1840, 0.0
  %v1844 = vld [vmem:[%s6] sm:$0x1]
  %v1846 = vlaneseq
  %v1847 = vshrl.u32 %v1846, 7
  %v1848 = vsub.s32 0, %v1847
  %v1849 = vrot.slane %v1844, %v1848
  %v1851 = vmul.f32 %v1843, %v1849
  %v1852 = vsel %vm1796, %v1851, 0.0
  %1853 = vadd.xlane.f32.xlu0 %v1852
  %v1854 = vpop.xlane.xlu0 %1853
  %v1855 = vld [vmem:[#allocation2] sm:$0x1]
  %v1857 = vlaneseq
  %v1858 = vshrl.u32 %v1857, 7
  %v1859 = vsub.s32 0, %v1858
  %v1860 = vrot.slane %v1855, %v1859
  %v1862 = vadd.f32 %v1854, %v1860
  %vm1863 = vcmask 1024
  %1864 = vst.msk [vmem:[%s9] sm:$0x3] %vm1863, %v1862
  // Predicated region
  $region38: #{db_cnn_forward.3} parent=0 // pred_check
    _
  $region39: #{db_cnn_forward.3} parent=0 // pred_check_branch
    %1866 = sbr.rel (0) target = $region41
  $region40: #{db_cnn_forward.3} parent=0 // pred_region
    _
  $region41: #{db_cnn_forward.3} parent=0 // pred_fallthru
    _
  // Predicated region
  $region42: #{db_cnn_forward.3} parent=0 // pred_check
    _
  $region43: #{db_cnn_forward.3} parent=0 // pred_check_branch
    %1868 = sbr.rel (0) target = $region45
  $region44: #{db_cnn_forward.3} parent=0 // pred_region
    _
  $region45: #{db_cnn_forward.3} parent=0 // pred_fallthru
    _

</llo_original>
